<compile_context>
chip_gen: v7x
topology: tpu7x:2x2x1
jax: 0.10.0
libtpu: 0.0.40
codegen_flags: <defaults>
</compile_context>

<pallas_src>
import functools

import jax
import jax.numpy as jnp
from jax.experimental import pallas as pl
from jax.experimental.pallas import tpu as pltpu


_VMEM_BUDGET_BYTES = 40 * 1024 * 1024   # conservative working-set budget (all gens)
_VMEM_LIMIT_BYTES = 48 * 1024 * 1024    # scoped-VMEM request; < v7x 64 MiB physical


def _activation(x, kind):
    if kind == "relu":
        return jnp.maximum(x, 0.0)
    elif kind == "swish":
        return x * jax.nn.sigmoid(x)
    raise ValueError("Unknown activation: " + str(kind))


def _resblock_kernel(x_ref, w0_ref, b0_ref, w1_ref, b1_ref, o_ref, *, act):
    # Whole block computed in VMEM: act -> matmul -> bias -> act -> matmul ->
    # bias -> residual add.  Matmul operands stay in the streamed dtype (bf16
    # path on the MXU when streaming bf16); elementwise math is f32.
    x = x_ref[...].astype(jnp.float32)
    h = _activation(x, act).astype(w0_ref.dtype)
    net = (jnp.dot(h, w0_ref[...], preferred_element_type=jnp.float32)
           + b0_ref[...].astype(jnp.float32))
    h2 = _activation(net, act).astype(w1_ref.dtype)
    dx = (jnp.dot(h2, w1_ref[...], preferred_element_type=jnp.float32)
          + b1_ref[...].astype(jnp.float32))
    o_ref[...] = (x + dx).astype(o_ref.dtype)


def _resblock_shortcut_kernel(x_ref, w0_ref, b0_ref, w1_ref, b1_ref, ws_ref,
                              o_ref, *, act):
    x = x_ref[...].astype(jnp.float32)
    h = _activation(x, act).astype(w0_ref.dtype)
    net = (jnp.dot(h, w0_ref[...], preferred_element_type=jnp.float32)
           + b0_ref[...].astype(jnp.float32))
    h2 = _activation(net, act).astype(w1_ref.dtype)
    dx = (jnp.dot(h2, w1_ref[...], preferred_element_type=jnp.float32)
          + b1_ref[...].astype(jnp.float32))
    x_s = jnp.dot(x_ref[...].astype(ws_ref.dtype), ws_ref[...],
                  preferred_element_type=jnp.float32)
    o_ref[...] = (x_s + dx).astype(o_ref.dtype)


def _vmem_estimate_bytes(tm, d_in, d_hidden, d_out, has_shortcut,
                         stream_itemsize, weight_bufs):
    w_elems = d_in * d_hidden + d_hidden * d_out + (d_in * d_out if has_shortcut else 0)
    b_elems = d_hidden + d_out
    weights = weight_bufs * (w_elems * stream_itemsize + b_elems * 4)
    x_tiles = 2 * tm * d_in * stream_itemsize        # double-buffered input stream
    o_tiles = 2 * tm * d_out * 4                     # double-buffered output stream
    interm = tm * (d_in + d_hidden + d_out) * 4      # f32 live intermediates (rough)
    return weights + x_tiles + o_tiles + interm


def _choose_tm(n_rows, requested, d_in, d_hidden, d_out, has_shortcut,
               stream_itemsize):
    tm = min(requested, n_rows)
    # Keep >= 2 grid steps so both v7x TensorCores get a share of the rows.
    if n_rows >= 16:
        tm = min(tm, max(8, n_rows // 2))
    tm = max(8, (tm // 8) * 8)   # sublane-aligned row tile
    # Shrink if the working set would blow the VMEM budget (matters for large
    # d_in / d_hidden configs, especially on v7x's 64 MiB VMEM).
    while tm > 8 and _vmem_estimate_bytes(tm, d_in, d_hidden, d_out,
                                          has_shortcut, stream_itemsize,
                                          weight_bufs=2) > _VMEM_BUDGET_BYTES:
        tm = max(8, ((tm // 2) // 8) * 8)
    return tm


def _build_call(kernel, n_pad, tm, d_in, d_hidden, d_out, has_shortcut,
                out_dtype, cost, single_buffer_weights):
    def full_spec(shape):
        idx = lambda i, _shape=shape: tuple(0 for _ in _shape)
        if single_buffer_weights:
            # Grid-invariant blocks: no need to double-buffer them.
            return pl.BlockSpec(shape, idx, pipeline_mode=pl.Buffered(1))
        return pl.BlockSpec(shape, idx)

    in_specs = [
        pl.BlockSpec((tm, d_in), lambda i: (i, 0)),   # x row tile (streamed)
        full_spec((d_in, d_hidden)),                  # w0 (resident)
        full_spec((1, d_hidden)),                     # b0
        full_spec((d_hidden, d_out)),                 # w1
        full_spec((1, d_out)),                        # b1
    ]
    if has_shortcut:
        in_specs.append(full_spec((d_in, d_out)))     # ws

    return pl.pallas_call(
        kernel,
        out_shape=jax.ShapeDtypeStruct((n_pad, d_out), out_dtype),
        grid_spec=pltpu.PrefetchScalarGridSpec(
            num_scalar_prefetch=0,
            grid=(n_pad // tm,),
            in_specs=in_specs,
            out_specs=pl.BlockSpec((tm, d_out), lambda i: (i, 0)),
        ),
        compiler_params=pltpu.CompilerParams(
            dimension_semantics=("parallel",),
            vmem_limit_bytes=_VMEM_LIMIT_BYTES,
        ),
        cost_estimate=cost,
    )


def resnet_block_fc(x, params, *, activation="relu", tm=512, stream_dtype=None):
    """x: (N, d_in).  params: dict with w0 (d_in,d_hidden), b0 (d_hidden,),
    w1 (d_hidden,d_out), b1 (d_out,) and optionally ws (d_in,d_out).

    stream_dtype: optional dtype (e.g. jnp.bfloat16) used for the HBM-streamed
    x / weight tensors and the MXU operands; accumulation and elementwise math
    are f32 and the output keeps x.dtype."""
    N, d_in = x.shape
    d_hidden = params["w0"].shape[1]
    d_out = params["w1"].shape[1]
    has_shortcut = "ws" in params
    out_dtype = x.dtype

    sdt = jnp.dtype(stream_dtype) if stream_dtype is not None else jnp.dtype(x.dtype)
    stream_itemsize = sdt.itemsize

    tm = _choose_tm(N, tm, d_in, d_hidden, d_out, has_shortcut, stream_itemsize)
    n_pad = pl.cdiv(N, tm) * tm

    x_in = x.astype(sdt)
    if n_pad != N:
        x_in = jnp.pad(x_in, ((0, n_pad - N), (0, 0)))

    # Weights streamed (once) in the same dtype as x; biases kept full precision.
    w0 = params["w0"].astype(sdt)
    w1 = params["w1"].astype(sdt)
    b0 = params["b0"].reshape(1, d_hidden)
    b1 = params["b1"].reshape(1, d_out)

    args = [x_in, w0, b0, w1, b1]
    if has_shortcut:
        kernel = functools.partial(_resblock_shortcut_kernel, act=activation)
        args.append(params["ws"].astype(sdt))
    else:
        kernel = functools.partial(_resblock_kernel, act=activation)

    w_elems = d_in * d_hidden + d_hidden * d_out + (d_in * d_out if has_shortcut else 0)
    flops = 2 * N * (d_in * d_hidden + d_hidden * d_out
                     + (d_in * d_out if has_shortcut else 0))
    transcendentals = N * (d_in + d_hidden) if activation == "swish" else 0
    bytes_accessed = (n_pad * d_in * stream_itemsize
                      + n_pad * d_out * jnp.dtype(out_dtype).itemsize
                      + w_elems * stream_itemsize
                      + (d_hidden + d_out) * 4)
    cost = pl.CostEstimate(flops=flops, transcendentals=transcendentals,
                           bytes_accessed=bytes_accessed)

    try:
        out = _build_call(kernel, n_pad, tm, d_in, d_hidden, d_out, has_shortcut,
                          out_dtype, cost, single_buffer_weights=True)(*args)
    except Exception:
        # Fallback: some Pallas versions reject Buffered(1); accept the default
        # double-buffered weight blocks (only 2x their small size in VMEM).
        out = _build_call(kernel, n_pad, tm, d_in, d_hidden, d_out, has_shortcut,
                          out_dtype, cost, single_buffer_weights=False)(*args)

    return out[:N] if n_pad != N else out


def _reference(x, params, activation="relu"):
    act = lambda v: _activation(v, activation)
    net = act(x) @ params["w0"] + params["b0"]
    dx = act(net) @ params["w1"] + params["b1"]
    x_s = x @ params["ws"] if "ws" in params else x
    return x_s + dx


def init_params(key, d_in, d_hidden, d_out, dtype=jnp.float32):
    k0, k1, k2, k3, k4 = jax.random.split(key, 5)
    params = {
        "w0": jax.random.normal(k0, (d_in, d_hidden), dtype) * 0.05,
        "b0": jax.random.normal(k1, (d_hidden,), dtype) * 0.05,
        "w1": jax.random.normal(k2, (d_hidden, d_out), dtype) * 0.05,
        "b1": jax.random.normal(k3, (d_out,), dtype) * 0.05,
    }
    if d_in != d_out:
        params["ws"] = jax.random.normal(k4, (d_in, d_out), dtype) * 0.05
    return params


if __name__ == "__main__":
    key = jax.random.PRNGKey(0)
    kx, kx2, kp, kp2 = jax.random.split(key, 4)

    # 1) Default module config: d_in=64, d_hidden=256, d_out=64 (no shortcut),
    #    relu, f32 streams.  N=256 -> tm capped at 128 -> 2 grid steps.
    N, d_in, d_hidden, d_out = 256, 64, 256, 64
    x = jax.random.normal(kx, (N, d_in), jnp.float32)
    params = init_params(kp, d_in, d_hidden, d_out)
    out = jax.block_until_ready(resnet_block_fc(x, params, activation="relu"))
    ref = _reference(x, params, "relu")
    assert out.shape == ref.shape and out.dtype == ref.dtype
    assert jnp.allclose(out, ref, atol=1e-4, rtol=1e-4), "relu path mismatch"

    # 2) Shortcut + swish path (d_in != d_out), lane-dense d_out=128, and a
    #    non-tile-divisible N to exercise the row-padding path.
    N2, d_out2 = 200, 128
    x2 = jax.random.normal(kx2, (N2, d_in), jnp.float32)
    params2 = init_params(kp2, d_in, d_hidden, d_out2)
    out2 = jax.block_until_ready(resnet_block_fc(x2, params2, activation="swish"))
    ref2 = _reference(x2, params2, "swish")
    assert out2.shape == ref2.shape
    assert jnp.allclose(out2, ref2, atol=1e-4, rtol=1e-4), "swish path mismatch"

    # 3) bf16-streamed variant (halves HBM read traffic; bf16 MXU, f32 accum).
    out3 = jax.block_until_ready(
        resnet_block_fc(x, params, activation="relu", stream_dtype=jnp.bfloat16))
    assert out3.dtype == x.dtype
    assert jnp.allclose(out3, ref, atol=1e-1, rtol=1e-1), "bf16 stream mismatch"

    print("KERNEL_OK")
</pallas_src>

<mosaic_0001>
module attributes {stable_mosaic.version = 11 : i64} {
  func.func @_resblock_kernel(%arg0: i32, %arg1: memref<128x64xf32, #tpu.memory_space<vmem>>, %arg2: memref<64x256xf32, #tpu.memory_space<vmem>>, %arg3: memref<1x256xf32, #tpu.memory_space<vmem>>, %arg4: memref<256x64xf32, #tpu.memory_space<vmem>>, %arg5: memref<1x64xf32, #tpu.memory_space<vmem>>, %arg6: memref<128x64xf32, #tpu.memory_space<vmem>>) attributes {dimension_semantics = [#tpu.dimension_semantics<parallel>], iteration_bounds = array<i64: 2>, scalar_prefetch = 0 : i64, scratch_operands = 0 : i64, tpu.core_type = #tpu.core_type<tc>, window_params = [{transform_indices = @transform_0, window_bounds = array<i64: 128, 64>}, {pipeline_mode = #tpu.pipeline_mode<synchronous>, transform_indices = @transform_1, window_bounds = array<i64: 64, 256>}, {pipeline_mode = #tpu.pipeline_mode<synchronous>, transform_indices = @transform_2, window_bounds = array<i64: 1, 256>}, {pipeline_mode = #tpu.pipeline_mode<synchronous>, transform_indices = @transform_3, window_bounds = array<i64: 256, 64>}, {pipeline_mode = #tpu.pipeline_mode<synchronous>, transform_indices = @transform_4, window_bounds = array<i64: 1, 64>}, {transform_indices = @transform_5, window_bounds = array<i64: 128, 64>}]} {
    %c0 = arith.constant 0 : index
    %c0_0 = arith.constant 0 : index
    %0 = vector.load %arg1[%c0, %c0_0] : memref<128x64xf32, #tpu.memory_space<vmem>>, vector<128x64xf32>
    %cst = arith.constant 0.000000e+00 : f32
    %1 = vector.broadcast %cst : f32 to vector<128x64xf32>
    %2 = arith.maximumf %0, %1 : vector<128x64xf32>
    %c0_1 = arith.constant 0 : index
    %c0_2 = arith.constant 0 : index
    %3 = vector.load %arg2[%c0_1, %c0_2] : memref<64x256xf32, #tpu.memory_space<vmem>>, vector<64x256xf32>
    %cst_3 = arith.constant dense<0.000000e+00> : vector<128x256xf32>
    %4 = tpu.matmul %2, %3, %cst_3 {dimension_numbers = #tpu.dot_dimension_numbers<[1], [0], [0], [1], [0, 0, 1, 1], [], []>} : vector<128x64xf32>, vector<64x256xf32>, vector<128x256xf32> -> vector<128x256xf32>
    %c0_4 = arith.constant 0 : index
    %c0_5 = arith.constant 0 : index
    %5 = vector.load %arg3[%c0_4, %c0_5] : memref<1x256xf32, #tpu.memory_space<vmem>>, vector<1x256xf32>
    %6 = vector.broadcast %5 : vector<1x256xf32> to vector<128x256xf32>
    %7 = arith.addf %4, %6 : vector<128x256xf32>
    %cst_6 = arith.constant 0.000000e+00 : f32
    %8 = vector.broadcast %cst_6 : f32 to vector<128x256xf32>
    %9 = arith.maximumf %7, %8 : vector<128x256xf32>
    %c0_7 = arith.constant 0 : index
    %c0_8 = arith.constant 0 : index
    %10 = vector.load %arg4[%c0_7, %c0_8] : memref<256x64xf32, #tpu.memory_space<vmem>>, vector<256x64xf32>
    %cst_9 = arith.constant dense<0.000000e+00> : vector<128x64xf32>
    %11 = tpu.matmul %9, %10, %cst_9 {dimension_numbers = #tpu.dot_dimension_numbers<[1], [0], [0], [1], [0, 0, 1, 1], [], []>} : vector<128x256xf32>, vector<256x64xf32>, vector<128x64xf32> -> vector<128x64xf32>
    %c0_10 = arith.constant 0 : index
    %c0_11 = arith.constant 0 : index
    %12 = vector.load %arg5[%c0_10, %c0_11] : memref<1x64xf32, #tpu.memory_space<vmem>>, vector<1x64xf32>
    %13 = vector.broadcast %12 : vector<1x64xf32> to vector<128x64xf32>
    %14 = arith.addf %11, %13 : vector<128x64xf32>
    %15 = arith.addf %0, %14 : vector<128x64xf32>
    %c0_12 = arith.constant 0 : index
    %c0_13 = arith.constant 0 : index
    %16 = vector.load %arg6[%c0_12, %c0_13] : memref<128x64xf32, #tpu.memory_space<vmem>>, vector<128x64xf32>
    tpu.vector_store %arg6[%c0_12, %c0_13], %15 {strides = array<i32>} : memref<128x64xf32, #tpu.memory_space<vmem>>, vector<128x64xf32>,
    return
  }
  func.func @transform_0(%arg0: i32) -> (i32, i32) {
    %c0_i32 = arith.constant 0 : i32
    %c0_i32_0 = arith.constant 0 : i32
    return %arg0, %c0_i32 : i32, i32
  }
  func.func @transform_1(%arg0: i32) -> (i32, i32) {
    %c0_i32 = arith.constant 0 : i32
    %c0_i32_0 = arith.constant 0 : i32
    %c0_i32_1 = arith.constant 0 : i32
    return %c0_i32, %c0_i32_0 : i32, i32
  }
  func.func @transform_2(%arg0: i32) -> (i32, i32) {
    %c0_i32 = arith.constant 0 : i32
    %c0_i32_0 = arith.constant 0 : i32
    %c0_i32_1 = arith.constant 0 : i32
    return %c0_i32, %c0_i32_0 : i32, i32
  }
  func.func @transform_3(%arg0: i32) -> (i32, i32) {
    %c0_i32 = arith.constant 0 : i32
    %c0_i32_0 = arith.constant 0 : i32
    %c0_i32_1 = arith.constant 0 : i32
    return %c0_i32, %c0_i32_0 : i32, i32
  }
  func.func @transform_4(%arg0: i32) -> (i32, i32) {
    %c0_i32 = arith.constant 0 : i32
    %c0_i32_0 = arith.constant 0 : i32
    %c0_i32_1 = arith.constant 0 : i32
    return %c0_i32, %c0_i32_0 : i32, i32
  }
  func.func @transform_5(%arg0: i32) -> (i32, i32) {
    %c0_i32 = arith.constant 0 : i32
    %c0_i32_0 = arith.constant 0 : i32
    return %arg0, %c0_i32 : i32, i32
  }
}

module attributes {stable_mosaic.version = 11 : i64} {
  func.func @_resblock_kernel(%arg0: i32, %arg1: memref<128x64xf32, #tpu.memory_space<vmem>>, %arg2: memref<64x256xf32, #tpu.memory_space<vmem>>, %arg3: memref<1x256xf32, #tpu.memory_space<vmem>>, %arg4: memref<256x64xf32, #tpu.memory_space<vmem>>, %arg5: memref<1x64xf32, #tpu.memory_space<vmem>>, %arg6: memref<128x64xf32, #tpu.memory_space<vmem>>) attributes {dimension_semantics = [#tpu.dimension_semantics<parallel>], iteration_bounds = array<i64: 2>, scalar_prefetch = 0 : i64, scratch_operands = 0 : i64, tpu.core_type = #tpu.core_type<tc>, window_params = [{transform_indices = @transform_0, window_bounds = array<i64: 128, 64>}, {pipeline_mode = #tpu.pipeline_mode<synchronous>, transform_indices = @transform_1, window_bounds = array<i64: 64, 256>}, {pipeline_mode = #tpu.pipeline_mode<synchronous>, transform_indices = @transform_2, window_bounds = array<i64: 1, 256>}, {pipeline_mode = #tpu.pipeline_mode<synchronous>, transform_indices = @transform_3, window_bounds = array<i64: 256, 64>}, {pipeline_mode = #tpu.pipeline_mode<synchronous>, transform_indices = @transform_4, window_bounds = array<i64: 1, 64>}, {transform_indices = @transform_5, window_bounds = array<i64: 128, 64>}]} {
    %c0 = arith.constant 0 : index
    %c0_0 = arith.constant 0 : index
    %0 = vector.load %arg1[%c0, %c0_0] : memref<128x64xf32, #tpu.memory_space<vmem>>, vector<128x64xf32>
    %cst = arith.constant 0.000000e+00 : f32
    %1 = vector.broadcast %cst : f32 to vector<128x64xf32>
    %2 = arith.maximumf %0, %1 : vector<128x64xf32>
    %c0_1 = arith.constant 0 : index
    %c0_2 = arith.constant 0 : index
    %3 = vector.load %arg2[%c0_1, %c0_2] : memref<64x256xf32, #tpu.memory_space<vmem>>, vector<64x256xf32>
    %cst_3 = arith.constant dense<0.000000e+00> : vector<128x256xf32>
    %4 = tpu.matmul %2, %3, %cst_3 {dimension_numbers = #tpu.dot_dimension_numbers<[1], [0], [0], [1], [0, 0, 1, 1], [], []>} : vector<128x64xf32>, vector<64x256xf32>, vector<128x256xf32> -> vector<128x256xf32>
    %c0_4 = arith.constant 0 : index
    %c0_5 = arith.constant 0 : index
    %5 = vector.load %arg3[%c0_4, %c0_5] : memref<1x256xf32, #tpu.memory_space<vmem>>, vector<1x256xf32>
    %6 = vector.broadcast %5 : vector<1x256xf32> to vector<128x256xf32>
    %7 = arith.addf %4, %6 : vector<128x256xf32>
    %cst_6 = arith.constant 0.000000e+00 : f32
    %8 = vector.broadcast %cst_6 : f32 to vector<128x256xf32>
    %9 = arith.maximumf %7, %8 : vector<128x256xf32>
    %c0_7 = arith.constant 0 : index
    %c0_8 = arith.constant 0 : index
    %10 = vector.load %arg4[%c0_7, %c0_8] : memref<256x64xf32, #tpu.memory_space<vmem>>, vector<256x64xf32>
    %cst_9 = arith.constant dense<0.000000e+00> : vector<128x64xf32>
    %11 = tpu.matmul %9, %10, %cst_9 {dimension_numbers = #tpu.dot_dimension_numbers<[1], [0], [0], [1], [0, 0, 1, 1], [], []>} : vector<128x256xf32>, vector<256x64xf32>, vector<128x64xf32> -> vector<128x64xf32>
    %c0_10 = arith.constant 0 : index
    %c0_11 = arith.constant 0 : index
    %12 = vector.load %arg5[%c0_10, %c0_11] : memref<1x64xf32, #tpu.memory_space<vmem>>, vector<1x64xf32>
    %13 = vector.broadcast %12 : vector<1x64xf32> to vector<128x64xf32>
    %14 = arith.addf %11, %13 : vector<128x64xf32>
    %15 = arith.addf %0, %14 : vector<128x64xf32>
    %c0_12 = arith.constant 0 : index
    %c0_13 = arith.constant 0 : index
    %16 = vector.load %arg6[%c0_12, %c0_13] : memref<128x64xf32, #tpu.memory_space<vmem>>, vector<128x64xf32>
    tpu.vector_store %arg6[%c0_12, %c0_13], %15 {strides = array<i32>} : memref<128x64xf32, #tpu.memory_space<vmem>>, vector<128x64xf32>,
    return
  }
  func.func @transform_0(%arg0: i32) -> (i32, i32) {
    %c0_i32 = arith.constant 0 : i32
    %c0_i32_0 = arith.constant 0 : i32
    return %arg0, %c0_i32 : i32, i32
  }
  func.func @transform_1(%arg0: i32) -> (i32, i32) {
    %c0_i32 = arith.constant 0 : i32
    %c0_i32_0 = arith.constant 0 : i32
    %c0_i32_1 = arith.constant 0 : i32
    return %c0_i32, %c0_i32_0 : i32, i32
  }
  func.func @transform_2(%arg0: i32) -> (i32, i32) {
    %c0_i32 = arith.constant 0 : i32
    %c0_i32_0 = arith.constant 0 : i32
    %c0_i32_1 = arith.constant 0 : i32
    return %c0_i32, %c0_i32_0 : i32, i32
  }
  func.func @transform_3(%arg0: i32) -> (i32, i32) {
    %c0_i32 = arith.constant 0 : i32
    %c0_i32_0 = arith.constant 0 : i32
    %c0_i32_1 = arith.constant 0 : i32
    return %c0_i32, %c0_i32_0 : i32, i32
  }
  func.func @transform_4(%arg0: i32) -> (i32, i32) {
    %c0_i32 = arith.constant 0 : i32
    %c0_i32_0 = arith.constant 0 : i32
    %c0_i32_1 = arith.constant 0 : i32
    return %c0_i32, %c0_i32_0 : i32, i32
  }
  func.func @transform_5(%arg0: i32) -> (i32, i32) {
    %c0_i32 = arith.constant 0 : i32
    %c0_i32_0 = arith.constant 0 : i32
    return %arg0, %c0_i32 : i32, i32
  }
}

</mosaic_0001>

<llo_original>
// kernel: tpu_custom_call.1
$region0: #{tpu_custom_call.1}
  #allocation0 [shape = 'u32[]', space=smem, size = 0x4, offset = 0x4, fixed_abs, tag = 'smem constant byte address 0x4 - core index']
  #allocation1 [shape = 'u32[144,128]{1,0:T(1,128)}', space=vmem, size = 0x12000, scoped, tag = 'internal scratch']
  %s0 = inlined_call_operand.vmem [shape: f32[256,64], index: 0, kind: input, shape index: {}]
  %s1 = inlined_call_operand.vmem [shape: f32[64,256], index: 1, kind: input, shape index: {}]
  %s2 = inlined_call_operand.vmem [shape: f32[1,256], index: 2, kind: input, shape index: {}]
  %s3 = inlined_call_operand.vmem [shape: f32[256,64], index: 3, kind: input, shape index: {}]
  %s4 = inlined_call_operand.vmem [shape: f32[1,64], index: 4, kind: input, shape index: {}]
  %s5 = inlined_call_operand.vmem [shape: f32[256,64], index: 5, kind: output, shape index: {}]
  %s6 = sld [smem:[#allocation0]]
  $region53: #{tpu_custom_call.1} parent=0
    _
  %s8 = ssub.s32 1, %s6
  %s9 = scalar_select 0, %s8, %s6
  loop: start=0, step=1, limit=4
  $region2: #{tpu_custom_call.1} parent=0 // loop_pre_header
    _
  $region3: #{tpu_custom_call.1} parent=0 // loop_header
    %s11 = sphi 0, %s15
    %p12 = scmp.ge.s32.totalorder %s11, 4
    %s21 = sphi 0, %s23
    %s24 = sphi 0, %s21
    %s25 = sphi 0, %s24
    %s41 = sphi 0, %s25
    %s45 = sphi 0, %s45
    %s47 = sphi 0, %s45
    %s48 = sphi 0, %s47
    %s62 = sphi 0, %s48
    %s66 = sphi 0, %s66
    %s68 = sphi 0, %s66
    %s69 = sphi 0, %s68
    %s83 = sphi 0, %s69
    %s87 = sphi 0, %s87
    %s89 = sphi 0, %s87
    %s90 = sphi 0, %s89
    %s104 = sphi 0, %s90
    %s108 = sphi 0, %s108
    %s110 = sphi 0, %s108
    %s111 = sphi 0, %s110
    %s125 = sphi 0, %s111
    %s131 = sphi 0, %s133
    %s134 = sphi 0, %s131
    %s135 = sphi 0, %s134
    %s151 = sphi 0, %s135
  $region4: #{tpu_custom_call.1} parent=0 // loop_header_branch
    %14 = sbr.rel (%p12) target = $region8
  $region5: #{tpu_custom_call.1} parent=0 // loop_body
    %s16 = ssub.s32 %s11, 1
    %s17 = ssub.s32 %s11, 2
    %s18 = sadd.s32 %s11, 1
    %s19 = ssub.s32 %s11, %s18
    %p20 = scmp.eq.s32.totalorder %s19, 0
    %s22 = sadd.s32 %s21, 1
    %s23 = scalar_select %p20, %s21, %s22
    %p26 = pneg %p20
    %p27 = scmp.eq.s32.totalorder %s11, 1
    %p28 = por %p26, %p27
    %p29 = scmp.ne.s32.totalorder %s21, %s24
    %p30 = scmp.eq.s32.totalorder %s11, 0
    %p31 = por %p29, %p30
    %p32 = scmp.ne.s32.totalorder %s21, %s24
    %p33 = scmp.eq.s32.totalorder %s16, 1
    %p34 = por %p32, %p33
    %p35 = scmp.ne.s32.totalorder %s24, %s25
    %p36 = scmp.eq.s32.totalorder %s16, 0
    %p37 = por %p35, %p36
    %p38 = scmp.ne.s32.totalorder %s24, %s25
    %p39 = scmp.eq.s32.totalorder %s17, 1
    %p40 = por %p38, %p39
    %p42 = scmp.ne.s32.totalorder %s25, %s41
    %p43 = scmp.eq.s32.totalorder %s17, 0
    %p44 = por %p42, %p43
    %s46 = sadd.s32 %s45, 1
    %p49 = scmp.eq.s32.totalorder %s11, 1
    %p50 = scmp.ne.s32.totalorder %s45, %s47
    %p51 = scmp.eq.s32.totalorder %s11, 0
    %p52 = por %p50, %p51
    %p53 = scmp.ne.s32.totalorder %s45, %s47
    %p54 = scmp.eq.s32.totalorder %s16, 1
    %p55 = por %p53, %p54
    %p56 = scmp.ne.s32.totalorder %s47, %s48
    %p57 = scmp.eq.s32.totalorder %s16, 0
    %p58 = por %p56, %p57
    %p59 = scmp.ne.s32.totalorder %s47, %s48
    %p60 = scmp.eq.s32.totalorder %s17, 1
    %p61 = por %p59, %p60
    %p63 = scmp.ne.s32.totalorder %s48, %s62
    %p64 = scmp.eq.s32.totalorder %s17, 0
    %p65 = por %p63, %p64
    %s67 = sadd.s32 %s66, 1
    %p70 = scmp.eq.s32.totalorder %s11, 1
    %p71 = scmp.ne.s32.totalorder %s66, %s68
    %p72 = scmp.eq.s32.totalorder %s11, 0
    %p73 = por %p71, %p72
    %p74 = scmp.ne.s32.totalorder %s66, %s68
    %p75 = scmp.eq.s32.totalorder %s16, 1
    %p76 = por %p74, %p75
    %p77 = scmp.ne.s32.totalorder %s68, %s69
    %p78 = scmp.eq.s32.totalorder %s16, 0
    %p79 = por %p77, %p78
    %p80 = scmp.ne.s32.totalorder %s68, %s69
    %p81 = scmp.eq.s32.totalorder %s17, 1
    %p82 = por %p80, %p81
    %p84 = scmp.ne.s32.totalorder %s69, %s83
    %p85 = scmp.eq.s32.totalorder %s17, 0
    %p86 = por %p84, %p85
    %s88 = sadd.s32 %s87, 1
    %p91 = scmp.eq.s32.totalorder %s11, 1
    %p92 = scmp.ne.s32.totalorder %s87, %s89
    %p93 = scmp.eq.s32.totalorder %s11, 0
    %p94 = por %p92, %p93
    %p95 = scmp.ne.s32.totalorder %s87, %s89
    %p96 = scmp.eq.s32.totalorder %s16, 1
    %p97 = por %p95, %p96
    %p98 = scmp.ne.s32.totalorder %s89, %s90
    %p99 = scmp.eq.s32.totalorder %s16, 0
    %p100 = por %p98, %p99
    %p101 = scmp.ne.s32.totalorder %s89, %s90
    %p102 = scmp.eq.s32.totalorder %s17, 1
    %p103 = por %p101, %p102
    %p105 = scmp.ne.s32.totalorder %s90, %s104
    %p106 = scmp.eq.s32.totalorder %s17, 0
    %p107 = por %p105, %p106
    %s109 = sadd.s32 %s108, 1
    %p112 = scmp.eq.s32.totalorder %s11, 1
    %p113 = scmp.ne.s32.totalorder %s108, %s110
    %p114 = scmp.eq.s32.totalorder %s11, 0
    %p115 = por %p113, %p114
    %p116 = scmp.ne.s32.totalorder %s108, %s110
    %p117 = scmp.eq.s32.totalorder %s16, 1
    %p118 = por %p116, %p117
    %p119 = scmp.ne.s32.totalorder %s110, %s111
    %p120 = scmp.eq.s32.totalorder %s16, 0
    %p121 = por %p119, %p120
    %p122 = scmp.ne.s32.totalorder %s110, %s111
    %p123 = scmp.eq.s32.totalorder %s17, 1
    %p124 = por %p122, %p123
    %p126 = scmp.ne.s32.totalorder %s111, %s125
    %p127 = scmp.eq.s32.totalorder %s17, 0
    %p128 = por %p126, %p127
    %s129 = ssub.s32 %s11, %s18
    %p130 = scmp.eq.s32.totalorder %s129, 0
    %s132 = sadd.s32 %s131, 1
    %s133 = scalar_select %p130, %s131, %s132
    %p136 = pneg %p130
    %p137 = scmp.eq.s32.totalorder %s11, 1
    %p138 = por %p136, %p137
    %p139 = scmp.ne.s32.totalorder %s131, %s134
    %p140 = scmp.eq.s32.totalorder %s11, 0
    %p141 = por %p139, %p140
    %p142 = scmp.ne.s32.totalorder %s131, %s134
    %p143 = scmp.eq.s32.totalorder %s16, 1
    %p144 = por %p142, %p143
    %p145 = scmp.ne.s32.totalorder %s134, %s135
    %p146 = scmp.eq.s32.totalorder %s16, 0
    %p147 = por %p145, %p146
    %p148 = scmp.ne.s32.totalorder %s134, %s135
    %p149 = scmp.eq.s32.totalorder %s17, 1
    %p150 = por %p148, %p149
    %p152 = scmp.ne.s32.totalorder %s135, %s151
    %p153 = scmp.eq.s32.totalorder %s17, 0
    %p154 = por %p152, %p153
    %p155 = scmp.le.s32.totalorder 1, %s11
    %p156 = scmp.lt.s32.totalorder %s11, 3
    %p157 = pnand %p155, %p156
    %p158 = pneg %p157
    // Predicated region
    $region9: #{tpu_custom_call.1} parent=5 // pred_check
      _
    $region10: #{tpu_custom_call.1} parent=5 // pred_check_branch
      %160 = sbr.rel (%p157) target = $region12
    $region11: #{tpu_custom_call.1} parent=5 // pred_region
      %s161 = ssub.s32 %s11, 1
      // Predicated region
      $region13: #{tpu_custom_call.1} parent=11 // pred_check
        %p162 = pneg %p58
      $region14: #{tpu_custom_call.1} parent=11 // pred_check_branch
        %164 = sbr.rel (%p162) target = $region16
      $region15: #{tpu_custom_call.1} parent=11 // pred_region
        _
      $region16: #{tpu_custom_call.1} parent=11 // pred_fallthru
        _
      // Predicated region
      $region17: #{tpu_custom_call.1} parent=11 // pred_check
        %p165 = pneg %p79
      $region18: #{tpu_custom_call.1} parent=11 // pred_check_branch
        %167 = sbr.rel (%p165) target = $region20
      $region19: #{tpu_custom_call.1} parent=11 // pred_region
        _
      $region20: #{tpu_custom_call.1} parent=11 // pred_fallthru
        _
      // Predicated region
      $region21: #{tpu_custom_call.1} parent=11 // pred_check
        %p168 = pneg %p100
      $region22: #{tpu_custom_call.1} parent=11 // pred_check_branch
        %170 = sbr.rel (%p168) target = $region24
      $region23: #{tpu_custom_call.1} parent=11 // pred_region
        _
      $region24: #{tpu_custom_call.1} parent=11 // pred_fallthru
        _
      // Predicated region
      $region25: #{tpu_custom_call.1} parent=11 // pred_check
        %p171 = pneg %p121
      $region26: #{tpu_custom_call.1} parent=11 // pred_check_branch
        %173 = sbr.rel (%p171) target = $region28
      $region27: #{tpu_custom_call.1} parent=11 // pred_region
        _
      $region28: #{tpu_custom_call.1} parent=11 // pred_fallthru
        _
    $region12: #{tpu_custom_call.1} parent=5 // pred_fallthru
      _
    %p174 = scmp.lt.s32.totalorder %s11, 2
    // Predicated region
    $region29: #{tpu_custom_call.1} parent=5 // pred_check
      %p175 = pneg %p174
    $region30: #{tpu_custom_call.1} parent=5 // pred_check_branch
      %177 = sbr.rel (%p175) target = $region32
    $region31: #{tpu_custom_call.1} parent=5 // pred_region
      // Predicated region
      $region33: #{tpu_custom_call.1} parent=31 // pred_check
        %p178 = pneg %p31
      $region34: #{tpu_custom_call.1} parent=31 // pred_check_branch
        %180 = sbr.rel (%p178) target = $region36
      $region35: #{tpu_custom_call.1} parent=31 // pred_region
        %s181 = smul.u32 16, %s11
        %p182 = scmp.lt.s32.totalorder %s181, 31
        %s183 = scalar_select %p182, %s181, 31
        %s184 = smul.addr %s183, 8
        %s185 = scalar_lea.vmem %s0, %s184
        %s186 = smul.u32 16, %s11
      $region36: #{tpu_custom_call.1} parent=31 // pred_fallthru
        _
    $region32: #{tpu_custom_call.1} parent=5 // pred_fallthru
      _
    %p187 = scmp.le.s32.totalorder 1, %s11
    %p188 = scmp.lt.s32.totalorder %s11, 3
    %p189 = pnand %p187, %p188
    %p190 = pneg %p189
    // Predicated region
    $region37: #{tpu_custom_call.1} parent=5 // pred_check
      _
    $region38: #{tpu_custom_call.1} parent=5 // pred_check_branch
      %192 = sbr.rel (%p189) target = $region40
    $region39: #{tpu_custom_call.1} parent=5 // pred_region
      %s193 = ssub.s32 %s11, 1
      %s194 = smul.u32 16, %s16
      %p195 = scmp.lt.s32.totalorder %s194, 31
      %s196 = scalar_select %p195, %s194, 31
      %s197 = smul.addr %s196, 8
      %s198 = scalar_lea.vmem %s0, %s197
      %p199 = pneg %p37
      %p200 = pneg %p34
      %p201 = pneg %p58
      %p202 = pneg %p55
      %p203 = pneg %p79
      %p204 = pneg %p76
      %p205 = pneg %p100
      %p206 = pneg %p97
      %p207 = pneg %p121
      %p208 = pneg %p118
      %p209 = pneg %p147
      %p210 = pneg %p144
      %s211 = smul.u32 16, %s16
      %p212 = scmp.lt.s32.totalorder %s211, 31
      %s213 = scalar_select %p212, %s211, 31
      %s214 = smul.addr %s213, 8
      %s215 = scalar_lea.vmem %s5, %s214
      %s216 = smul.u32 16, %s16
      %p217 = scmp.lt.s32.totalorder %s216, 31
      %s218 = scalar_select %p217, %s216, 31
      %s219 = smul.addr %s218, 8
      %s220 = scalar_lea.vmem %s0, %s219
      %s221 = smul.u32 16, %s16
      %s222 = smul.u32 16, %s16
      %p223 = scmp.lt.s32.totalorder %s222, 31
      %s224 = scalar_select %p223, %s222, 31
      %s225 = smul.addr %s224, 8
      %s226 = scalar_lea.vmem %s5, %s225
      %s227 = smul.u32 16, %s16
      %v228 = vld [vmem:[%s220] sm:$0xff]
      %v229 = vld [vmem:[%s220 + $0x8] sm:$0xff]
      %v230 = vld [vmem:[%s220 + $0x10] sm:$0xff]
      %v231 = vld [vmem:[%s220 + $0x18] sm:$0xff]
      %v232 = vld [vmem:[%s220 + $0x20] sm:$0xff]
      %v233 = vld [vmem:[%s220 + $0x28] sm:$0xff]
      %v234 = vld [vmem:[%s220 + $0x30] sm:$0xff]
      %v235 = vld [vmem:[%s220 + $0x38] sm:$0xff]
      %v236 = vld [vmem:[%s220 + $0x40] sm:$0xff]
      %v237 = vld [vmem:[%s220 + $0x48] sm:$0xff]
      %v238 = vld [vmem:[%s220 + $0x50] sm:$0xff]
      %v239 = vld [vmem:[%s220 + $0x58] sm:$0xff]
      %v240 = vld [vmem:[%s220 + $0x60] sm:$0xff]
      %v241 = vld [vmem:[%s220 + $0x68] sm:$0xff]
      %v242 = vld [vmem:[%s220 + $0x70] sm:$0xff]
      %v243 = vld [vmem:[%s220 + $0x78] sm:$0xff]
      %v244 = vmax.f32 %v228, 0.0
      %v245 = vmax.f32 %v229, 0.0
      %v246 = vmax.f32 %v230, 0.0
      %v247 = vmax.f32 %v231, 0.0
      %v248 = vmax.f32 %v232, 0.0
      %v249 = vmax.f32 %v233, 0.0
      %v250 = vmax.f32 %v234, 0.0
      %v251 = vmax.f32 %v235, 0.0
      %v252 = vmax.f32 %v236, 0.0
      %v253 = vmax.f32 %v237, 0.0
      %v254 = vmax.f32 %v238, 0.0
      %v255 = vmax.f32 %v239, 0.0
      %v256 = vmax.f32 %v240, 0.0
      %v257 = vmax.f32 %v241, 0.0
      %v258 = vmax.f32 %v242, 0.0
      %v259 = vmax.f32 %v243, 0.0
      %v260 = vld [vmem:[%s1] sm:$0xff]
      %v261 = vld [vmem:[%s1 + $0x8] sm:$0xff]
      %v262 = vld [vmem:[%s1 + $0x10] sm:$0xff]
      %v263 = vld [vmem:[%s1 + $0x18] sm:$0xff]
      %v264 = vld [vmem:[%s1 + $0x20] sm:$0xff]
      %v265 = vld [vmem:[%s1 + $0x28] sm:$0xff]
      %v266 = vld [vmem:[%s1 + $0x30] sm:$0xff]
      %v267 = vld [vmem:[%s1 + $0x38] sm:$0xff]
      %v268 = vld [vmem:[%s1 + $0x40] sm:$0xff]
      %v269 = vld [vmem:[%s1 + $0x48] sm:$0xff]
      %v270 = vld [vmem:[%s1 + $0x50] sm:$0xff]
      %v271 = vld [vmem:[%s1 + $0x58] sm:$0xff]
      %v272 = vld [vmem:[%s1 + $0x60] sm:$0xff]
      %v273 = vld [vmem:[%s1 + $0x68] sm:$0xff]
      %v274 = vld [vmem:[%s1 + $0x70] sm:$0xff]
      %v275 = vld [vmem:[%s1 + $0x78] sm:$0xff]
      %v276 = vld [vmem:[%s2] sm:$0x3]
      %v278 = vlaneseq
      %v279 = vshrl.u32 %v278, 7
      %v280 = vsub.s32 0, %v279
      %v281 = vrot.slane %v276, %v280
      %v282 = vlaneseq
      %v283 = vshrl.u32 %v282, 7
      %v284 = vsub.s32 1, %v283
      %v285 = vrot.slane %v276, %v284
      %vm288 = vcmask 523264
      %v290 = vsel %vm288, %v244, 0
      %v293 = vsel %vm288, %v245, 0
      %v296 = vsel %vm288, %v246, 0
      %v299 = vsel %vm288, %v247, 0
      %v302 = vsel %vm288, %v248, 0
      %v305 = vsel %vm288, %v249, 0
      %v308 = vsel %vm288, %v250, 0
      %v311 = vsel %vm288, %v251, 0
      %v314 = vsel %vm288, %v252, 0
      %v317 = vsel %vm288, %v253, 0
      %v320 = vsel %vm288, %v254, 0
      %v323 = vsel %vm288, %v255, 0
      %v326 = vsel %vm288, %v256, 0
      %v329 = vsel %vm288, %v257, 0
      %v332 = vsel %vm288, %v258, 0
      %v335 = vsel %vm288, %v259, 0
      %337 = vmatprep.subr.mxu0 %v261
      %338 = vmatpush1.msra.mxu0 %v260
      %339 = vmatprep.subr.mxu0 %v263
      %340 = vmatpush1.msra.mxu0 %v262
      %341 = vmatprep.subr.mxu0 %v265
      %342 = vmatpush1.msra.mxu0 %v264
      %343 = vmatprep.subr.mxu0 %v267
      %344 = vmatpush1.msra.mxu0 %v266
      %345 = vmatprep.subr.mxu0 %v269
      %346 = vmatpush1.msra.mxu0 %v268
      %347 = vmatprep.subr.mxu0 %v271
      %348 = vmatpush1.msra.mxu0 %v270
      %349 = vmatprep.subr.mxu0 %v273
      %350 = vmatpush1.msra.mxu0 %v272
      %351 = vmatprep.subr.mxu0 %v275
      %352 = vmatpush1.msra.mxu0 %v274
      %353 = vmatprep.subr.mxu0 0.0
      %354 = vmatpush1.msra.mxu0 0.0
      %355 = vmatprep.subr.mxu0 0.0
      %356 = vmatpush1.msra.mxu0 0.0
      %357 = vmatprep.subr.mxu0 0.0
      %358 = vmatpush1.msra.mxu0 0.0
      %359 = vmatprep.subr.mxu0 0.0
      %360 = vmatpush1.msra.mxu0 0.0
      %361 = vmatprep.subr.mxu0 0.0
      %362 = vmatpush1.msra.mxu0 0.0
      %363 = vmatprep.subr.mxu0 0.0
      %364 = vmatpush1.msra.mxu0 0.0
      %365 = vmatprep.subr.mxu0 0.0
      %366 = vmatpush1.msra.mxu0 0.0
      %367 = vmatprep.subr.mxu0 0.0
      %368 = vmatpush1.msra.mxu0 0.0
      %369 = vmatprep.subr.mxu0 0.0
      %370 = vmatpush1.msra.mxu0 0.0
      %371 = vmatprep.subr.mxu0 0.0
      %372 = vmatpush1.msra.mxu0 0.0
      %373 = vmatprep.subr.mxu0 0.0
      %374 = vmatpush1.msra.mxu0 0.0
      %375 = vmatprep.subr.mxu0 0.0
      %376 = vmatpush1.msra.mxu0 0.0
      %377 = vmatprep.subr.mxu0 0.0
      %378 = vmatpush1.msra.mxu0 0.0
      %379 = vmatprep.subr.mxu0 0.0
      %380 = vmatpush1.msra.mxu0 0.0
      %381 = vmatprep.subr.mxu0 0.0
      %382 = vmatpush1.msra.mxu0 0.0
      %383 = vmatprep.subr.mxu0 0.0
      %384 = vmatpush1.msra.mxu0 0.0
      %385 = vmatprep.subr.mxu0 0.0
      %386 = vmatpush1.msra.mxu0 0.0
      %387 = vmatprep.subr.mxu0 0.0
      %388 = vmatpush1.msra.mxu0 0.0
      %389 = vmatprep.subr.mxu0 0.0
      %390 = vmatpush1.msra.mxu0 0.0
      %391 = vmatprep.subr.mxu0 0.0
      %392 = vmatpush1.msra.mxu0 0.0
      %393 = vmatprep.subr.mxu0 0.0
      %394 = vmatpush1.msra.mxu0 0.0
      %395 = vmatprep.subr.mxu0 0.0
      %396 = vmatpush1.msra.mxu0 0.0
      %397 = vmatprep.subr.mxu0 0.0
      %398 = vmatpush1.msra.mxu0 0.0
      %399 = vmatprep.subr.mxu0 0.0
      %400 = vmatpush1.msra.mxu0 0.0
      %401 = vmatprep.mubr.f32.mxu0 0.0
      %402 = vmatmul.mubr.f32.gmra.mrb[0].mxu0 %v290
      %v403 = vpop.f32.mrb[0].mxu0
      %v404 = vadd.f32 %v281, %v403
      %v405 = vpop.f32.mrb[0].mxu0
      %v406 = vadd.f32 %v285, %v405
      %407 = vmatprep.mubr.f32.mxu0 0.0
      %408 = vmatmul.mubr.f32.gmra.mrb[0].mxu0 %v293
      %v409 = vpop.f32.mrb[0].mxu0
      %v410 = vadd.f32 %v281, %v409
      %v411 = vpop.f32.mrb[0].mxu0
      %v412 = vadd.f32 %v285, %v411
      %413 = vmatprep.mubr.f32.mxu0 0.0
      %414 = vmatmul.mubr.f32.gmra.mrb[0].mxu0 %v296
      %v415 = vpop.f32.mrb[0].mxu0
      %v416 = vadd.f32 %v281, %v415
      %v417 = vpop.f32.mrb[0].mxu0
      %v418 = vadd.f32 %v285, %v417
      %419 = vmatprep.mubr.f32.mxu0 0.0
      %420 = vmatmul.mubr.f32.gmra.mrb[0].mxu0 %v299
      %v421 = vpop.f32.mrb[0].mxu0
      %v422 = vadd.f32 %v281, %v421
      %v423 = vpop.f32.mrb[0].mxu0
      %v424 = vadd.f32 %v285, %v423
      %425 = vmatprep.mubr.f32.mxu0 0.0
      %426 = vmatmul.mubr.f32.gmra.mrb[0].mxu0 %v302
      %v427 = vpop.f32.mrb[0].mxu0
      %v428 = vadd.f32 %v281, %v427
      %v429 = vpop.f32.mrb[0].mxu0
      %v430 = vadd.f32 %v285, %v429
      %431 = vmatprep.mubr.f32.mxu0 0.0
      %432 = vmatmul.mubr.f32.gmra.mrb[0].mxu0 %v305
      %v433 = vpop.f32.mrb[0].mxu0
      %v434 = vadd.f32 %v281, %v433
      %v435 = vpop.f32.mrb[0].mxu0
      %v436 = vadd.f32 %v285, %v435
      %437 = vmatprep.mubr.f32.mxu0 0.0
      %438 = vmatmul.mubr.f32.gmra.mrb[0].mxu0 %v308
      %v439 = vpop.f32.mrb[0].mxu0
      %v440 = vadd.f32 %v281, %v439
      %v441 = vpop.f32.mrb[0].mxu0
      %v442 = vadd.f32 %v285, %v441
      %443 = vmatprep.mubr.f32.mxu0 0.0
      %444 = vmatmul.mubr.f32.gmra.mrb[0].mxu0 %v311
      %v445 = vpop.f32.mrb[0].mxu0
      %v446 = vadd.f32 %v281, %v445
      %v447 = vpop.f32.mrb[0].mxu0
      %v448 = vadd.f32 %v285, %v447
      %449 = vmatprep.mubr.f32.mxu0 0.0
      %450 = vmatmul.mubr.f32.gmra.mrb[0].mxu0 %v314
      %v451 = vpop.f32.mrb[0].mxu0
      %v452 = vadd.f32 %v281, %v451
      %v453 = vpop.f32.mrb[0].mxu0
      %v454 = vadd.f32 %v285, %v453
      %455 = vmatprep.mubr.f32.mxu0 0.0
      %456 = vmatmul.mubr.f32.gmra.mrb[0].mxu0 %v317
      %v457 = vpop.f32.mrb[0].mxu0
      %v458 = vadd.f32 %v281, %v457
      %v459 = vpop.f32.mrb[0].mxu0
      %v460 = vadd.f32 %v285, %v459
      %461 = vmatprep.mubr.f32.mxu0 0.0
      %462 = vmatmul.mubr.f32.gmra.mrb[0].mxu0 %v320
      %v463 = vpop.f32.mrb[0].mxu0
      %v464 = vadd.f32 %v281, %v463
      %v465 = vpop.f32.mrb[0].mxu0
      %v466 = vadd.f32 %v285, %v465
      %467 = vmatprep.mubr.f32.mxu0 0.0
      %468 = vmatmul.mubr.f32.gmra.mrb[0].mxu0 %v323
      %v469 = vpop.f32.mrb[0].mxu0
      %v470 = vadd.f32 %v281, %v469
      %v471 = vpop.f32.mrb[0].mxu0
      %v472 = vadd.f32 %v285, %v471
      %473 = vmatprep.mubr.f32.mxu0 0.0
      %474 = vmatmul.mubr.f32.gmra.mrb[0].mxu0 %v326
      %v475 = vpop.f32.mrb[0].mxu0
      %v476 = vadd.f32 %v281, %v475
      %v477 = vpop.f32.mrb[0].mxu0
      %v478 = vadd.f32 %v285, %v477
      %479 = vmatprep.mubr.f32.mxu0 0.0
      %480 = vmatmul.mubr.f32.gmra.mrb[0].mxu0 %v329
      %v481 = vpop.f32.mrb[0].mxu0
      %v482 = vadd.f32 %v281, %v481
      %v483 = vpop.f32.mrb[0].mxu0
      %v484 = vadd.f32 %v285, %v483
      %485 = vmatprep.mubr.f32.mxu0 0.0
      %486 = vmatmul.mubr.f32.gmra.mrb[0].mxu0 %v332
      %v487 = vpop.f32.mrb[0].mxu0
      %v488 = vadd.f32 %v281, %v487
      %v489 = vpop.f32.mrb[0].mxu0
      %v490 = vadd.f32 %v285, %v489
      %491 = vmatprep.mubr.f32.mxu0 0.0
      %492 = vmatmul.mubr.f32.gmra.mrb[0].mxu0 %v335
      %v493 = vpop.f32.mrb[0].mxu0
      %v494 = vadd.f32 %v281, %v493
      %v495 = vpop.f32.mrb[0].mxu0
      %v496 = vadd.f32 %v285, %v495
      %497 = vdwg.mxu0
      %v498 = vmax.f32 %v404, 0.0
      %v499 = vmax.f32 %v406, 0.0
      %v500 = vmax.f32 %v410, 0.0
      %v501 = vmax.f32 %v412, 0.0
      %v502 = vmax.f32 %v416, 0.0
      %v503 = vmax.f32 %v418, 0.0
      %v504 = vmax.f32 %v422, 0.0
      %v505 = vmax.f32 %v424, 0.0
      %v506 = vmax.f32 %v428, 0.0
      %v507 = vmax.f32 %v430, 0.0
      %v508 = vmax.f32 %v434, 0.0
      %v509 = vmax.f32 %v436, 0.0
      %v510 = vmax.f32 %v440, 0.0
      %v511 = vmax.f32 %v442, 0.0
      %v512 = vmax.f32 %v446, 0.0
      %v513 = vmax.f32 %v448, 0.0
      %v514 = vmax.f32 %v452, 0.0
      %v515 = vmax.f32 %v454, 0.0
      %v516 = vmax.f32 %v458, 0.0
      %v517 = vmax.f32 %v460, 0.0
      %v518 = vmax.f32 %v464, 0.0
      %v519 = vmax.f32 %v466, 0.0
      %v520 = vmax.f32 %v470, 0.0
      %v521 = vmax.f32 %v472, 0.0
      %v522 = vmax.f32 %v476, 0.0
      %v523 = vmax.f32 %v478, 0.0
      %v524 = vmax.f32 %v482, 0.0
      %v525 = vmax.f32 %v484, 0.0
      %v526 = vmax.f32 %v488, 0.0
      %v527 = vmax.f32 %v490, 0.0
      %v528 = vmax.f32 %v494, 0.0
      %v529 = vmax.f32 %v496, 0.0
      %v530 = vld [vmem:[%s3] sm:$0xff]
      %v531 = vld [vmem:[%s3 + $0x8] sm:$0xff]
      %v532 = vld [vmem:[%s3 + $0x10] sm:$0xff]
      %v533 = vld [vmem:[%s3 + $0x18] sm:$0xff]
      %v534 = vld [vmem:[%s3 + $0x20] sm:$0xff]
      %v535 = vld [vmem:[%s3 + $0x28] sm:$0xff]
      %v536 = vld [vmem:[%s3 + $0x30] sm:$0xff]
      %v537 = vld [vmem:[%s3 + $0x38] sm:$0xff]
      %v538 = vld [vmem:[%s3 + $0x40] sm:$0xff]
      %v539 = vld [vmem:[%s3 + $0x48] sm:$0xff]
      %v540 = vld [vmem:[%s3 + $0x50] sm:$0xff]
      %v541 = vld [vmem:[%s3 + $0x58] sm:$0xff]
      %v542 = vld [vmem:[%s3 + $0x60] sm:$0xff]
      %v543 = vld [vmem:[%s3 + $0x68] sm:$0xff]
      %v544 = vld [vmem:[%s3 + $0x70] sm:$0xff]
      %v545 = vld [vmem:[%s3 + $0x78] sm:$0xff]
      %v546 = vld [vmem:[%s3 + $0x80] sm:$0xff]
      %v547 = vld [vmem:[%s3 + $0x88] sm:$0xff]
      %v548 = vld [vmem:[%s3 + $0x90] sm:$0xff]
      %v549 = vld [vmem:[%s3 + $0x98] sm:$0xff]
      %v550 = vld [vmem:[%s3 + $0xa0] sm:$0xff]
      %v551 = vld [vmem:[%s3 + $0xa8] sm:$0xff]
      %v552 = vld [vmem:[%s3 + $0xb0] sm:$0xff]
      %v553 = vld [vmem:[%s3 + $0xb8] sm:$0xff]
      %v554 = vld [vmem:[%s3 + $0xc0] sm:$0xff]
      %v555 = vld [vmem:[%s3 + $0xc8] sm:$0xff]
      %v556 = vld [vmem:[%s3 + $0xd0] sm:$0xff]
      %v557 = vld [vmem:[%s3 + $0xd8] sm:$0xff]
      %v558 = vld [vmem:[%s3 + $0xe0] sm:$0xff]
      %v559 = vld [vmem:[%s3 + $0xe8] sm:$0xff]
      %v560 = vld [vmem:[%s3 + $0xf0] sm:$0xff]
      %v561 = vld [vmem:[%s3 + $0xf8] sm:$0xff]
      %v562 = vld [vmem:[%s4] sm:$0x1]
      %v564 = vlaneseq
      %v565 = vshrl.u32 %v564, 7
      %v566 = vsub.s32 0, %v565
      %v567 = vrot.slane %v562, %v566
      %569 = vmatprep.subr.mxu0 0.0
      %570 = vmatpush1.msra.mxu0 %v530
      %571 = vmatprep.subr.mxu0 0.0
      %572 = vmatpush1.msra.mxu0 %v531
      %573 = vmatprep.subr.mxu0 0.0
      %574 = vmatpush1.msra.mxu0 %v532
      %575 = vmatprep.subr.mxu0 0.0
      %576 = vmatpush1.msra.mxu0 %v533
      %577 = vmatprep.subr.mxu0 0.0
      %578 = vmatpush1.msra.mxu0 %v534
      %579 = vmatprep.subr.mxu0 0.0
      %580 = vmatpush1.msra.mxu0 %v535
      %581 = vmatprep.subr.mxu0 0.0
      %582 = vmatpush1.msra.mxu0 %v536
      %583 = vmatprep.subr.mxu0 0.0
      %584 = vmatpush1.msra.mxu0 %v537
      %585 = vmatprep.subr.mxu0 0.0
      %586 = vmatpush1.msra.mxu0 %v538
      %587 = vmatprep.subr.mxu0 0.0
      %588 = vmatpush1.msra.mxu0 %v539
      %589 = vmatprep.subr.mxu0 0.0
      %590 = vmatpush1.msra.mxu0 %v540
      %591 = vmatprep.subr.mxu0 0.0
      %592 = vmatpush1.msra.mxu0 %v541
      %593 = vmatprep.subr.mxu0 0.0
      %594 = vmatpush1.msra.mxu0 %v542
      %595 = vmatprep.subr.mxu0 0.0
      %596 = vmatpush1.msra.mxu0 %v543
      %597 = vmatprep.subr.mxu0 0.0
      %598 = vmatpush1.msra.mxu0 %v544
      %599 = vmatprep.subr.mxu0 0.0
      %600 = vmatpush1.msra.mxu0 %v545
      %601 = vmatprep.subr.mxu0 0.0
      %602 = vmatpush1.msra.mxu0 %v546
      %603 = vmatprep.subr.mxu0 0.0
      %604 = vmatpush1.msra.mxu0 %v547
      %605 = vmatprep.subr.mxu0 0.0
      %606 = vmatpush1.msra.mxu0 %v548
      %607 = vmatprep.subr.mxu0 0.0
      %608 = vmatpush1.msra.mxu0 %v549
      %609 = vmatprep.subr.mxu0 0.0
      %610 = vmatpush1.msra.mxu0 %v550
      %611 = vmatprep.subr.mxu0 0.0
      %612 = vmatpush1.msra.mxu0 %v551
      %613 = vmatprep.subr.mxu0 0.0
      %614 = vmatpush1.msra.mxu0 %v552
      %615 = vmatprep.subr.mxu0 0.0
      %616 = vmatpush1.msra.mxu0 %v553
      %617 = vmatprep.subr.mxu0 0.0
      %618 = vmatpush1.msra.mxu0 %v554
      %619 = vmatprep.subr.mxu0 0.0
      %620 = vmatpush1.msra.mxu0 %v555
      %621 = vmatprep.subr.mxu0 0.0
      %622 = vmatpush1.msra.mxu0 %v556
      %623 = vmatprep.subr.mxu0 0.0
      %624 = vmatpush1.msra.mxu0 %v557
      %625 = vmatprep.subr.mxu0 0.0
      %626 = vmatpush1.msra.mxu0 %v558
      %627 = vmatprep.subr.mxu0 0.0
      %628 = vmatpush1.msra.mxu0 %v559
      %629 = vmatprep.subr.mxu0 0.0
      %630 = vmatpush1.msra.mxu0 %v560
      %631 = vmatprep.subr.mxu0 0.0
      %632 = vmatpush1.msra.mxu0 %v561
      %633 = vmatprep.mubr.f32.mxu0 %v499
      %634 = vmatmul.mubr.f32.gmra.mrb[0].mxu0 %v498
      %v635 = vpop.f32.mrb[0].mxu0
      %v636 = vadd.f32 %v567, %v635
      %v637 = vpop.f32.mrb[0].mxu0
      %638 = vmatprep.mubr.f32.mxu0 %v501
      %639 = vmatmul.mubr.f32.gmra.mrb[0].mxu0 %v500
      %v640 = vpop.f32.mrb[0].mxu0
      %v641 = vadd.f32 %v567, %v640
      %v642 = vpop.f32.mrb[0].mxu0
      %643 = vmatprep.mubr.f32.mxu0 %v503
      %644 = vmatmul.mubr.f32.gmra.mrb[0].mxu0 %v502
      %v645 = vpop.f32.mrb[0].mxu0
      %v646 = vadd.f32 %v567, %v645
      %v647 = vpop.f32.mrb[0].mxu0
      %648 = vmatprep.mubr.f32.mxu0 %v505
      %649 = vmatmul.mubr.f32.gmra.mrb[0].mxu0 %v504
      %v650 = vpop.f32.mrb[0].mxu0
      %v651 = vadd.f32 %v567, %v650
      %v652 = vpop.f32.mrb[0].mxu0
      %653 = vmatprep.mubr.f32.mxu0 %v507
      %654 = vmatmul.mubr.f32.gmra.mrb[0].mxu0 %v506
      %v655 = vpop.f32.mrb[0].mxu0
      %v656 = vadd.f32 %v567, %v655
      %v657 = vpop.f32.mrb[0].mxu0
      %658 = vmatprep.mubr.f32.mxu0 %v509
      %659 = vmatmul.mubr.f32.gmra.mrb[0].mxu0 %v508
      %v660 = vpop.f32.mrb[0].mxu0
      %v661 = vadd.f32 %v567, %v660
      %v662 = vpop.f32.mrb[0].mxu0
      %663 = vmatprep.mubr.f32.mxu0 %v511
      %664 = vmatmul.mubr.f32.gmra.mrb[0].mxu0 %v510
      %v665 = vpop.f32.mrb[0].mxu0
      %v666 = vadd.f32 %v567, %v665
      %v667 = vpop.f32.mrb[0].mxu0
      %668 = vmatprep.mubr.f32.mxu0 %v513
      %669 = vmatmul.mubr.f32.gmra.mrb[0].mxu0 %v512
      %v670 = vpop.f32.mrb[0].mxu0
      %v671 = vadd.f32 %v567, %v670
      %v672 = vpop.f32.mrb[0].mxu0
      %673 = vmatprep.mubr.f32.mxu0 %v515
      %674 = vmatmul.mubr.f32.gmra.mrb[0].mxu0 %v514
      %v675 = vpop.f32.mrb[0].mxu0
      %v676 = vadd.f32 %v567, %v675
      %v677 = vpop.f32.mrb[0].mxu0
      %678 = vmatprep.mubr.f32.mxu0 %v517
      %679 = vmatmul.mubr.f32.gmra.mrb[0].mxu0 %v516
      %v680 = vpop.f32.mrb[0].mxu0
      %v681 = vadd.f32 %v567, %v680
      %v682 = vpop.f32.mrb[0].mxu0
      %683 = vmatprep.mubr.f32.mxu0 %v519
      %684 = vmatmul.mubr.f32.gmra.mrb[0].mxu0 %v518
      %v685 = vpop.f32.mrb[0].mxu0
      %v686 = vadd.f32 %v567, %v685
      %v687 = vpop.f32.mrb[0].mxu0
      %688 = vmatprep.mubr.f32.mxu0 %v521
      %689 = vmatmul.mubr.f32.gmra.mrb[0].mxu0 %v520
      %v690 = vpop.f32.mrb[0].mxu0
      %v691 = vadd.f32 %v567, %v690
      %v692 = vpop.f32.mrb[0].mxu0
      %693 = vmatprep.mubr.f32.mxu0 %v523
      %694 = vmatmul.mubr.f32.gmra.mrb[0].mxu0 %v522
      %v695 = vpop.f32.mrb[0].mxu0
      %v696 = vadd.f32 %v567, %v695
      %v697 = vpop.f32.mrb[0].mxu0
      %698 = vmatprep.mubr.f32.mxu0 %v525
      %699 = vmatmul.mubr.f32.gmra.mrb[0].mxu0 %v524
      %v700 = vpop.f32.mrb[0].mxu0
      %v701 = vadd.f32 %v567, %v700
      %v702 = vpop.f32.mrb[0].mxu0
      %703 = vmatprep.mubr.f32.mxu0 %v527
      %704 = vmatmul.mubr.f32.gmra.mrb[0].mxu0 %v526
      %v705 = vpop.f32.mrb[0].mxu0
      %v706 = vadd.f32 %v567, %v705
      %v707 = vpop.f32.mrb[0].mxu0
      %708 = vmatprep.mubr.f32.mxu0 %v529
      %709 = vmatmul.mubr.f32.gmra.mrb[0].mxu0 %v528
      %v710 = vpop.f32.mrb[0].mxu0
      %v711 = vadd.f32 %v567, %v710
      %v712 = vpop.f32.mrb[0].mxu0
      %713 = vdwg.mxu0
      %v714 = vadd.f32 %v228, %v636
      %v715 = vadd.f32 %v229, %v641
      %v716 = vadd.f32 %v230, %v646
      %v717 = vadd.f32 %v231, %v651
      %v718 = vadd.f32 %v232, %v656
      %v719 = vadd.f32 %v233, %v661
      %v720 = vadd.f32 %v234, %v666
      %v721 = vadd.f32 %v235, %v671
      %v722 = vadd.f32 %v236, %v676
      %v723 = vadd.f32 %v237, %v681
      %v724 = vadd.f32 %v238, %v686
      %v725 = vadd.f32 %v239, %v691
      %v726 = vadd.f32 %v240, %v696
      %v727 = vadd.f32 %v241, %v701
      %v728 = vadd.f32 %v242, %v706
      %v729 = vadd.f32 %v243, %v711
      %730 = vst.msk [vmem:[%s226] sm:$0xff] %vm288, %v714
      %731 = vst.msk [vmem:[%s226 + $0x8] sm:$0xff] %vm288, %v715
      %732 = vst.msk [vmem:[%s226 + $0x10] sm:$0xff] %vm288, %v716
      %733 = vst.msk [vmem:[%s226 + $0x18] sm:$0xff] %vm288, %v717
      %734 = vst.msk [vmem:[%s226 + $0x20] sm:$0xff] %vm288, %v718
      %735 = vst.msk [vmem:[%s226 + $0x28] sm:$0xff] %vm288, %v719
      %736 = vst.msk [vmem:[%s226 + $0x30] sm:$0xff] %vm288, %v720
      %737 = vst.msk [vmem:[%s226 + $0x38] sm:$0xff] %vm288, %v721
      %738 = vst.msk [vmem:[%s226 + $0x40] sm:$0xff] %vm288, %v722
      %739 = vst.msk [vmem:[%s226 + $0x48] sm:$0xff] %vm288, %v723
      %740 = vst.msk [vmem:[%s226 + $0x50] sm:$0xff] %vm288, %v724
      %741 = vst.msk [vmem:[%s226 + $0x58] sm:$0xff] %vm288, %v725
      %742 = vst.msk [vmem:[%s226 + $0x60] sm:$0xff] %vm288, %v726
      %743 = vst.msk [vmem:[%s226 + $0x68] sm:$0xff] %vm288, %v727
      %744 = vst.msk [vmem:[%s226 + $0x70] sm:$0xff] %vm288, %v728
      %745 = vst.msk [vmem:[%s226 + $0x78] sm:$0xff] %vm288, %v729
      %s746 = smul.u32 16, %s16
      %p747 = scmp.lt.s32.totalorder %s746, 31
      %s748 = scalar_select %p747, %s746, 31
      %s749 = smul.addr %s748, 8
      %s750 = scalar_lea.vmem %s5, %s749
      // Predicated region
      $region41: #{tpu_custom_call.1} parent=39 // pred_check
        %p751 = pneg %p144
      $region42: #{tpu_custom_call.1} parent=39 // pred_check_branch
        %753 = sbr.rel (%p751) target = $region44
      $region43: #{tpu_custom_call.1} parent=39 // pred_region
        %s754 = smul.u32 16, %s16
      $region44: #{tpu_custom_call.1} parent=39 // pred_fallthru
        _
    $region40: #{tpu_custom_call.1} parent=5 // pred_fallthru
      _
    %p755 = scmp.le.s32.totalorder 2, %s11
    // Predicated region
    $region45: #{tpu_custom_call.1} parent=5 // pred_check
      %p756 = pneg %p755
    $region46: #{tpu_custom_call.1} parent=5 // pred_check_branch
      %758 = sbr.rel (%p756) target = $region48
    $region47: #{tpu_custom_call.1} parent=5 // pred_region
      %s759 = ssub.s32 %s11, 2
      // Predicated region
      $region49: #{tpu_custom_call.1} parent=47 // pred_check
        %p760 = pneg %p150
      $region50: #{tpu_custom_call.1} parent=47 // pred_check_branch
        %762 = sbr.rel (%p760) target = $region52
      $region51: #{tpu_custom_call.1} parent=47 // pred_region
        %s763 = smul.u32 16, %s17
        %p764 = scmp.lt.s32.totalorder %s763, 31
        %s765 = scalar_select %p764, %s763, 31
        %s766 = smul.addr %s765, 8
        %s767 = scalar_lea.vmem %s5, %s766
      $region52: #{tpu_custom_call.1} parent=47 // pred_fallthru
        _
    $region48: #{tpu_custom_call.1} parent=5 // pred_fallthru
      _
  $region6: #{tpu_custom_call.1} parent=0 // loop_footer
    %s15 = sadd.s32 1, %s11
  $region7: #{tpu_custom_call.1} parent=0 // loop_footer_branch
    %10 = sbr.rel target = $region3
  $region8: #{tpu_custom_call.1} parent=0 // loop_exit
    _

// kernel: tpu_custom_call.1
$region0: #{tpu_custom_call.1}
  #allocation0 [shape = 'u32[]', space=smem, size = 0x4, offset = 0x4, fixed_abs, tag = 'smem constant byte address 0x4 - core index']
  #allocation1 [shape = 'u32[144,128]{1,0:T(1,128)}', space=vmem, size = 0x12000, scoped, tag = 'internal scratch']
  %s0 = inlined_call_operand.vmem [shape: f32[256,64], index: 0, kind: input, shape index: {}]
  %s1 = inlined_call_operand.vmem [shape: f32[64,256], index: 1, kind: input, shape index: {}]
  %s2 = inlined_call_operand.vmem [shape: f32[1,256], index: 2, kind: input, shape index: {}]
  %s3 = inlined_call_operand.vmem [shape: f32[256,64], index: 3, kind: input, shape index: {}]
  %s4 = inlined_call_operand.vmem [shape: f32[1,64], index: 4, kind: input, shape index: {}]
  %s5 = inlined_call_operand.vmem [shape: f32[256,64], index: 5, kind: output, shape index: {}]
  %s6 = sld [smem:[#allocation0]]
  $region53: #{tpu_custom_call.1} parent=0
    _
  %s8 = ssub.s32 1, %s6
  %s9 = scalar_select 0, %s8, %s6
  loop: start=0, step=1, limit=4
  $region2: #{tpu_custom_call.1} parent=0 // loop_pre_header
    _
  $region3: #{tpu_custom_call.1} parent=0 // loop_header
    %s11 = sphi 0, %s15
    %p12 = scmp.ge.s32.totalorder %s11, 4
    %s21 = sphi 0, %s23
    %s24 = sphi 0, %s21
    %s25 = sphi 0, %s24
    %s41 = sphi 0, %s25
    %s45 = sphi 0, %s45
    %s47 = sphi 0, %s45
    %s48 = sphi 0, %s47
    %s62 = sphi 0, %s48
    %s66 = sphi 0, %s66
    %s68 = sphi 0, %s66
    %s69 = sphi 0, %s68
    %s83 = sphi 0, %s69
    %s87 = sphi 0, %s87
    %s89 = sphi 0, %s87
    %s90 = sphi 0, %s89
    %s104 = sphi 0, %s90
    %s108 = sphi 0, %s108
    %s110 = sphi 0, %s108
    %s111 = sphi 0, %s110
    %s125 = sphi 0, %s111
    %s131 = sphi 0, %s133
    %s134 = sphi 0, %s131
    %s135 = sphi 0, %s134
    %s151 = sphi 0, %s135
  $region4: #{tpu_custom_call.1} parent=0 // loop_header_branch
    %14 = sbr.rel (%p12) target = $region8
  $region5: #{tpu_custom_call.1} parent=0 // loop_body
    %s16 = ssub.s32 %s11, 1
    %s17 = ssub.s32 %s11, 2
    %s18 = sadd.s32 %s11, 1
    %s19 = ssub.s32 %s11, %s18
    %p20 = scmp.eq.s32.totalorder %s19, 0
    %s22 = sadd.s32 %s21, 1
    %s23 = scalar_select %p20, %s21, %s22
    %p26 = pneg %p20
    %p27 = scmp.eq.s32.totalorder %s11, 1
    %p28 = por %p26, %p27
    %p29 = scmp.ne.s32.totalorder %s21, %s24
    %p30 = scmp.eq.s32.totalorder %s11, 0
    %p31 = por %p29, %p30
    %p32 = scmp.ne.s32.totalorder %s21, %s24
    %p33 = scmp.eq.s32.totalorder %s16, 1
    %p34 = por %p32, %p33
    %p35 = scmp.ne.s32.totalorder %s24, %s25
    %p36 = scmp.eq.s32.totalorder %s16, 0
    %p37 = por %p35, %p36
    %p38 = scmp.ne.s32.totalorder %s24, %s25
    %p39 = scmp.eq.s32.totalorder %s17, 1
    %p40 = por %p38, %p39
    %p42 = scmp.ne.s32.totalorder %s25, %s41
    %p43 = scmp.eq.s32.totalorder %s17, 0
    %p44 = por %p42, %p43
    %s46 = sadd.s32 %s45, 1
    %p49 = scmp.eq.s32.totalorder %s11, 1
    %p50 = scmp.ne.s32.totalorder %s45, %s47
    %p51 = scmp.eq.s32.totalorder %s11, 0
    %p52 = por %p50, %p51
    %p53 = scmp.ne.s32.totalorder %s45, %s47
    %p54 = scmp.eq.s32.totalorder %s16, 1
    %p55 = por %p53, %p54
    %p56 = scmp.ne.s32.totalorder %s47, %s48
    %p57 = scmp.eq.s32.totalorder %s16, 0
    %p58 = por %p56, %p57
    %p59 = scmp.ne.s32.totalorder %s47, %s48
    %p60 = scmp.eq.s32.totalorder %s17, 1
    %p61 = por %p59, %p60
    %p63 = scmp.ne.s32.totalorder %s48, %s62
    %p64 = scmp.eq.s32.totalorder %s17, 0
    %p65 = por %p63, %p64
    %s67 = sadd.s32 %s66, 1
    %p70 = scmp.eq.s32.totalorder %s11, 1
    %p71 = scmp.ne.s32.totalorder %s66, %s68
    %p72 = scmp.eq.s32.totalorder %s11, 0
    %p73 = por %p71, %p72
    %p74 = scmp.ne.s32.totalorder %s66, %s68
    %p75 = scmp.eq.s32.totalorder %s16, 1
    %p76 = por %p74, %p75
    %p77 = scmp.ne.s32.totalorder %s68, %s69
    %p78 = scmp.eq.s32.totalorder %s16, 0
    %p79 = por %p77, %p78
    %p80 = scmp.ne.s32.totalorder %s68, %s69
    %p81 = scmp.eq.s32.totalorder %s17, 1
    %p82 = por %p80, %p81
    %p84 = scmp.ne.s32.totalorder %s69, %s83
    %p85 = scmp.eq.s32.totalorder %s17, 0
    %p86 = por %p84, %p85
    %s88 = sadd.s32 %s87, 1
    %p91 = scmp.eq.s32.totalorder %s11, 1
    %p92 = scmp.ne.s32.totalorder %s87, %s89
    %p93 = scmp.eq.s32.totalorder %s11, 0
    %p94 = por %p92, %p93
    %p95 = scmp.ne.s32.totalorder %s87, %s89
    %p96 = scmp.eq.s32.totalorder %s16, 1
    %p97 = por %p95, %p96
    %p98 = scmp.ne.s32.totalorder %s89, %s90
    %p99 = scmp.eq.s32.totalorder %s16, 0
    %p100 = por %p98, %p99
    %p101 = scmp.ne.s32.totalorder %s89, %s90
    %p102 = scmp.eq.s32.totalorder %s17, 1
    %p103 = por %p101, %p102
    %p105 = scmp.ne.s32.totalorder %s90, %s104
    %p106 = scmp.eq.s32.totalorder %s17, 0
    %p107 = por %p105, %p106
    %s109 = sadd.s32 %s108, 1
    %p112 = scmp.eq.s32.totalorder %s11, 1
    %p113 = scmp.ne.s32.totalorder %s108, %s110
    %p114 = scmp.eq.s32.totalorder %s11, 0
    %p115 = por %p113, %p114
    %p116 = scmp.ne.s32.totalorder %s108, %s110
    %p117 = scmp.eq.s32.totalorder %s16, 1
    %p118 = por %p116, %p117
    %p119 = scmp.ne.s32.totalorder %s110, %s111
    %p120 = scmp.eq.s32.totalorder %s16, 0
    %p121 = por %p119, %p120
    %p122 = scmp.ne.s32.totalorder %s110, %s111
    %p123 = scmp.eq.s32.totalorder %s17, 1
    %p124 = por %p122, %p123
    %p126 = scmp.ne.s32.totalorder %s111, %s125
    %p127 = scmp.eq.s32.totalorder %s17, 0
    %p128 = por %p126, %p127
    %s129 = ssub.s32 %s11, %s18
    %p130 = scmp.eq.s32.totalorder %s129, 0
    %s132 = sadd.s32 %s131, 1
    %s133 = scalar_select %p130, %s131, %s132
    %p136 = pneg %p130
    %p137 = scmp.eq.s32.totalorder %s11, 1
    %p138 = por %p136, %p137
    %p139 = scmp.ne.s32.totalorder %s131, %s134
    %p140 = scmp.eq.s32.totalorder %s11, 0
    %p141 = por %p139, %p140
    %p142 = scmp.ne.s32.totalorder %s131, %s134
    %p143 = scmp.eq.s32.totalorder %s16, 1
    %p144 = por %p142, %p143
    %p145 = scmp.ne.s32.totalorder %s134, %s135
    %p146 = scmp.eq.s32.totalorder %s16, 0
    %p147 = por %p145, %p146
    %p148 = scmp.ne.s32.totalorder %s134, %s135
    %p149 = scmp.eq.s32.totalorder %s17, 1
    %p150 = por %p148, %p149
    %p152 = scmp.ne.s32.totalorder %s135, %s151
    %p153 = scmp.eq.s32.totalorder %s17, 0
    %p154 = por %p152, %p153
    %p155 = scmp.le.s32.totalorder 1, %s11
    %p156 = scmp.lt.s32.totalorder %s11, 3
    %p157 = pnand %p155, %p156
    %p158 = pneg %p157
    // Predicated region
    $region9: #{tpu_custom_call.1} parent=5 // pred_check
      _
    $region10: #{tpu_custom_call.1} parent=5 // pred_check_branch
      %160 = sbr.rel (%p157) target = $region12
    $region11: #{tpu_custom_call.1} parent=5 // pred_region
      %s161 = ssub.s32 %s11, 1
      // Predicated region
      $region13: #{tpu_custom_call.1} parent=11 // pred_check
        %p162 = pneg %p58
      $region14: #{tpu_custom_call.1} parent=11 // pred_check_branch
        %164 = sbr.rel (%p162) target = $region16
      $region15: #{tpu_custom_call.1} parent=11 // pred_region
        _
      $region16: #{tpu_custom_call.1} parent=11 // pred_fallthru
        _
      // Predicated region
      $region17: #{tpu_custom_call.1} parent=11 // pred_check
        %p165 = pneg %p79
      $region18: #{tpu_custom_call.1} parent=11 // pred_check_branch
        %167 = sbr.rel (%p165) target = $region20
      $region19: #{tpu_custom_call.1} parent=11 // pred_region
        _
      $region20: #{tpu_custom_call.1} parent=11 // pred_fallthru
        _
      // Predicated region
      $region21: #{tpu_custom_call.1} parent=11 // pred_check
        %p168 = pneg %p100
      $region22: #{tpu_custom_call.1} parent=11 // pred_check_branch
        %170 = sbr.rel (%p168) target = $region24
      $region23: #{tpu_custom_call.1} parent=11 // pred_region
        _
      $region24: #{tpu_custom_call.1} parent=11 // pred_fallthru
        _
      // Predicated region
      $region25: #{tpu_custom_call.1} parent=11 // pred_check
        %p171 = pneg %p121
      $region26: #{tpu_custom_call.1} parent=11 // pred_check_branch
        %173 = sbr.rel (%p171) target = $region28
      $region27: #{tpu_custom_call.1} parent=11 // pred_region
        _
      $region28: #{tpu_custom_call.1} parent=11 // pred_fallthru
        _
    $region12: #{tpu_custom_call.1} parent=5 // pred_fallthru
      _
    %p174 = scmp.lt.s32.totalorder %s11, 2
    // Predicated region
    $region29: #{tpu_custom_call.1} parent=5 // pred_check
      %p175 = pneg %p174
    $region30: #{tpu_custom_call.1} parent=5 // pred_check_branch
      %177 = sbr.rel (%p175) target = $region32
    $region31: #{tpu_custom_call.1} parent=5 // pred_region
      // Predicated region
      $region33: #{tpu_custom_call.1} parent=31 // pred_check
        %p178 = pneg %p31
      $region34: #{tpu_custom_call.1} parent=31 // pred_check_branch
        %180 = sbr.rel (%p178) target = $region36
      $region35: #{tpu_custom_call.1} parent=31 // pred_region
        %s181 = smul.u32 16, %s11
        %p182 = scmp.lt.s32.totalorder %s181, 31
        %s183 = scalar_select %p182, %s181, 31
        %s184 = smul.addr %s183, 8
        %s185 = scalar_lea.vmem %s0, %s184
        %s186 = smul.u32 16, %s11
      $region36: #{tpu_custom_call.1} parent=31 // pred_fallthru
        _
    $region32: #{tpu_custom_call.1} parent=5 // pred_fallthru
      _
    %p187 = scmp.le.s32.totalorder 1, %s11
    %p188 = scmp.lt.s32.totalorder %s11, 3
    %p189 = pnand %p187, %p188
    %p190 = pneg %p189
    // Predicated region
    $region37: #{tpu_custom_call.1} parent=5 // pred_check
      _
    $region38: #{tpu_custom_call.1} parent=5 // pred_check_branch
      %192 = sbr.rel (%p189) target = $region40
    $region39: #{tpu_custom_call.1} parent=5 // pred_region
      %s193 = ssub.s32 %s11, 1
      %s194 = smul.u32 16, %s16
      %p195 = scmp.lt.s32.totalorder %s194, 31
      %s196 = scalar_select %p195, %s194, 31
      %s197 = smul.addr %s196, 8
      %s198 = scalar_lea.vmem %s0, %s197
      %p199 = pneg %p37
      %p200 = pneg %p34
      %p201 = pneg %p58
      %p202 = pneg %p55
      %p203 = pneg %p79
      %p204 = pneg %p76
      %p205 = pneg %p100
      %p206 = pneg %p97
      %p207 = pneg %p121
      %p208 = pneg %p118
      %p209 = pneg %p147
      %p210 = pneg %p144
      %s211 = smul.u32 16, %s16
      %p212 = scmp.lt.s32.totalorder %s211, 31
      %s213 = scalar_select %p212, %s211, 31
      %s214 = smul.addr %s213, 8
      %s215 = scalar_lea.vmem %s5, %s214
      %s216 = smul.u32 16, %s16
      %p217 = scmp.lt.s32.totalorder %s216, 31
      %s218 = scalar_select %p217, %s216, 31
      %s219 = smul.addr %s218, 8
      %s220 = scalar_lea.vmem %s0, %s219
      %s221 = smul.u32 16, %s16
      %s222 = smul.u32 16, %s16
      %p223 = scmp.lt.s32.totalorder %s222, 31
      %s224 = scalar_select %p223, %s222, 31
      %s225 = smul.addr %s224, 8
      %s226 = scalar_lea.vmem %s5, %s225
      %s227 = smul.u32 16, %s16
      %v228 = vld [vmem:[%s220] sm:$0xff]
      %v229 = vld [vmem:[%s220 + $0x8] sm:$0xff]
      %v230 = vld [vmem:[%s220 + $0x10] sm:$0xff]
      %v231 = vld [vmem:[%s220 + $0x18] sm:$0xff]
      %v232 = vld [vmem:[%s220 + $0x20] sm:$0xff]
      %v233 = vld [vmem:[%s220 + $0x28] sm:$0xff]
      %v234 = vld [vmem:[%s220 + $0x30] sm:$0xff]
      %v235 = vld [vmem:[%s220 + $0x38] sm:$0xff]
      %v236 = vld [vmem:[%s220 + $0x40] sm:$0xff]
      %v237 = vld [vmem:[%s220 + $0x48] sm:$0xff]
      %v238 = vld [vmem:[%s220 + $0x50] sm:$0xff]
      %v239 = vld [vmem:[%s220 + $0x58] sm:$0xff]
      %v240 = vld [vmem:[%s220 + $0x60] sm:$0xff]
      %v241 = vld [vmem:[%s220 + $0x68] sm:$0xff]
      %v242 = vld [vmem:[%s220 + $0x70] sm:$0xff]
      %v243 = vld [vmem:[%s220 + $0x78] sm:$0xff]
      %v244 = vmax.f32 %v228, 0.0
      %v245 = vmax.f32 %v229, 0.0
      %v246 = vmax.f32 %v230, 0.0
      %v247 = vmax.f32 %v231, 0.0
      %v248 = vmax.f32 %v232, 0.0
      %v249 = vmax.f32 %v233, 0.0
      %v250 = vmax.f32 %v234, 0.0
      %v251 = vmax.f32 %v235, 0.0
      %v252 = vmax.f32 %v236, 0.0
      %v253 = vmax.f32 %v237, 0.0
      %v254 = vmax.f32 %v238, 0.0
      %v255 = vmax.f32 %v239, 0.0
      %v256 = vmax.f32 %v240, 0.0
      %v257 = vmax.f32 %v241, 0.0
      %v258 = vmax.f32 %v242, 0.0
      %v259 = vmax.f32 %v243, 0.0
      %v260 = vld [vmem:[%s1] sm:$0xff]
      %v261 = vld [vmem:[%s1 + $0x8] sm:$0xff]
      %v262 = vld [vmem:[%s1 + $0x10] sm:$0xff]
      %v263 = vld [vmem:[%s1 + $0x18] sm:$0xff]
      %v264 = vld [vmem:[%s1 + $0x20] sm:$0xff]
      %v265 = vld [vmem:[%s1 + $0x28] sm:$0xff]
      %v266 = vld [vmem:[%s1 + $0x30] sm:$0xff]
      %v267 = vld [vmem:[%s1 + $0x38] sm:$0xff]
      %v268 = vld [vmem:[%s1 + $0x40] sm:$0xff]
      %v269 = vld [vmem:[%s1 + $0x48] sm:$0xff]
      %v270 = vld [vmem:[%s1 + $0x50] sm:$0xff]
      %v271 = vld [vmem:[%s1 + $0x58] sm:$0xff]
      %v272 = vld [vmem:[%s1 + $0x60] sm:$0xff]
      %v273 = vld [vmem:[%s1 + $0x68] sm:$0xff]
      %v274 = vld [vmem:[%s1 + $0x70] sm:$0xff]
      %v275 = vld [vmem:[%s1 + $0x78] sm:$0xff]
      %v276 = vld [vmem:[%s2] sm:$0x3]
      %v278 = vlaneseq
      %v279 = vshrl.u32 %v278, 7
      %v280 = vsub.s32 0, %v279
      %v281 = vrot.slane %v276, %v280
      %v282 = vlaneseq
      %v283 = vshrl.u32 %v282, 7
      %v284 = vsub.s32 1, %v283
      %v285 = vrot.slane %v276, %v284
      %vm288 = vcmask 523264
      %v290 = vsel %vm288, %v244, 0
      %v293 = vsel %vm288, %v245, 0
      %v296 = vsel %vm288, %v246, 0
      %v299 = vsel %vm288, %v247, 0
      %v302 = vsel %vm288, %v248, 0
      %v305 = vsel %vm288, %v249, 0
      %v308 = vsel %vm288, %v250, 0
      %v311 = vsel %vm288, %v251, 0
      %v314 = vsel %vm288, %v252, 0
      %v317 = vsel %vm288, %v253, 0
      %v320 = vsel %vm288, %v254, 0
      %v323 = vsel %vm288, %v255, 0
      %v326 = vsel %vm288, %v256, 0
      %v329 = vsel %vm288, %v257, 0
      %v332 = vsel %vm288, %v258, 0
      %v335 = vsel %vm288, %v259, 0
      %337 = vmatprep.subr.mxu0 %v261
      %338 = vmatpush1.msra.mxu0 %v260
      %339 = vmatprep.subr.mxu0 %v263
      %340 = vmatpush1.msra.mxu0 %v262
      %341 = vmatprep.subr.mxu0 %v265
      %342 = vmatpush1.msra.mxu0 %v264
      %343 = vmatprep.subr.mxu0 %v267
      %344 = vmatpush1.msra.mxu0 %v266
      %345 = vmatprep.subr.mxu0 %v269
      %346 = vmatpush1.msra.mxu0 %v268
      %347 = vmatprep.subr.mxu0 %v271
      %348 = vmatpush1.msra.mxu0 %v270
      %349 = vmatprep.subr.mxu0 %v273
      %350 = vmatpush1.msra.mxu0 %v272
      %351 = vmatprep.subr.mxu0 %v275
      %352 = vmatpush1.msra.mxu0 %v274
      %353 = vmatprep.subr.mxu0 0.0
      %354 = vmatpush1.msra.mxu0 0.0
      %355 = vmatprep.subr.mxu0 0.0
      %356 = vmatpush1.msra.mxu0 0.0
      %357 = vmatprep.subr.mxu0 0.0
      %358 = vmatpush1.msra.mxu0 0.0
      %359 = vmatprep.subr.mxu0 0.0
      %360 = vmatpush1.msra.mxu0 0.0
      %361 = vmatprep.subr.mxu0 0.0
      %362 = vmatpush1.msra.mxu0 0.0
      %363 = vmatprep.subr.mxu0 0.0
      %364 = vmatpush1.msra.mxu0 0.0
      %365 = vmatprep.subr.mxu0 0.0
      %366 = vmatpush1.msra.mxu0 0.0
      %367 = vmatprep.subr.mxu0 0.0
      %368 = vmatpush1.msra.mxu0 0.0
      %369 = vmatprep.subr.mxu0 0.0
      %370 = vmatpush1.msra.mxu0 0.0
      %371 = vmatprep.subr.mxu0 0.0
      %372 = vmatpush1.msra.mxu0 0.0
      %373 = vmatprep.subr.mxu0 0.0
      %374 = vmatpush1.msra.mxu0 0.0
      %375 = vmatprep.subr.mxu0 0.0
      %376 = vmatpush1.msra.mxu0 0.0
      %377 = vmatprep.subr.mxu0 0.0
      %378 = vmatpush1.msra.mxu0 0.0
      %379 = vmatprep.subr.mxu0 0.0
      %380 = vmatpush1.msra.mxu0 0.0
      %381 = vmatprep.subr.mxu0 0.0
      %382 = vmatpush1.msra.mxu0 0.0
      %383 = vmatprep.subr.mxu0 0.0
      %384 = vmatpush1.msra.mxu0 0.0
      %385 = vmatprep.subr.mxu0 0.0
      %386 = vmatpush1.msra.mxu0 0.0
      %387 = vmatprep.subr.mxu0 0.0
      %388 = vmatpush1.msra.mxu0 0.0
      %389 = vmatprep.subr.mxu0 0.0
      %390 = vmatpush1.msra.mxu0 0.0
      %391 = vmatprep.subr.mxu0 0.0
      %392 = vmatpush1.msra.mxu0 0.0
      %393 = vmatprep.subr.mxu0 0.0
      %394 = vmatpush1.msra.mxu0 0.0
      %395 = vmatprep.subr.mxu0 0.0
      %396 = vmatpush1.msra.mxu0 0.0
      %397 = vmatprep.subr.mxu0 0.0
      %398 = vmatpush1.msra.mxu0 0.0
      %399 = vmatprep.subr.mxu0 0.0
      %400 = vmatpush1.msra.mxu0 0.0
      %401 = vmatprep.mubr.f32.mxu0 0.0
      %402 = vmatmul.mubr.f32.gmra.mrb[0].mxu0 %v290
      %v403 = vpop.f32.mrb[0].mxu0
      %v404 = vadd.f32 %v281, %v403
      %v405 = vpop.f32.mrb[0].mxu0
      %v406 = vadd.f32 %v285, %v405
      %407 = vmatprep.mubr.f32.mxu0 0.0
      %408 = vmatmul.mubr.f32.gmra.mrb[0].mxu0 %v293
      %v409 = vpop.f32.mrb[0].mxu0
      %v410 = vadd.f32 %v281, %v409
      %v411 = vpop.f32.mrb[0].mxu0
      %v412 = vadd.f32 %v285, %v411
      %413 = vmatprep.mubr.f32.mxu0 0.0
      %414 = vmatmul.mubr.f32.gmra.mrb[0].mxu0 %v296
      %v415 = vpop.f32.mrb[0].mxu0
      %v416 = vadd.f32 %v281, %v415
      %v417 = vpop.f32.mrb[0].mxu0
      %v418 = vadd.f32 %v285, %v417
      %419 = vmatprep.mubr.f32.mxu0 0.0
      %420 = vmatmul.mubr.f32.gmra.mrb[0].mxu0 %v299
      %v421 = vpop.f32.mrb[0].mxu0
      %v422 = vadd.f32 %v281, %v421
      %v423 = vpop.f32.mrb[0].mxu0
      %v424 = vadd.f32 %v285, %v423
      %425 = vmatprep.mubr.f32.mxu0 0.0
      %426 = vmatmul.mubr.f32.gmra.mrb[0].mxu0 %v302
      %v427 = vpop.f32.mrb[0].mxu0
      %v428 = vadd.f32 %v281, %v427
      %v429 = vpop.f32.mrb[0].mxu0
      %v430 = vadd.f32 %v285, %v429
      %431 = vmatprep.mubr.f32.mxu0 0.0
      %432 = vmatmul.mubr.f32.gmra.mrb[0].mxu0 %v305
      %v433 = vpop.f32.mrb[0].mxu0
      %v434 = vadd.f32 %v281, %v433
      %v435 = vpop.f32.mrb[0].mxu0
      %v436 = vadd.f32 %v285, %v435
      %437 = vmatprep.mubr.f32.mxu0 0.0
      %438 = vmatmul.mubr.f32.gmra.mrb[0].mxu0 %v308
      %v439 = vpop.f32.mrb[0].mxu0
      %v440 = vadd.f32 %v281, %v439
      %v441 = vpop.f32.mrb[0].mxu0
      %v442 = vadd.f32 %v285, %v441
      %443 = vmatprep.mubr.f32.mxu0 0.0
      %444 = vmatmul.mubr.f32.gmra.mrb[0].mxu0 %v311
      %v445 = vpop.f32.mrb[0].mxu0
      %v446 = vadd.f32 %v281, %v445
      %v447 = vpop.f32.mrb[0].mxu0
      %v448 = vadd.f32 %v285, %v447
      %449 = vmatprep.mubr.f32.mxu0 0.0
      %450 = vmatmul.mubr.f32.gmra.mrb[0].mxu0 %v314
      %v451 = vpop.f32.mrb[0].mxu0
      %v452 = vadd.f32 %v281, %v451
      %v453 = vpop.f32.mrb[0].mxu0
      %v454 = vadd.f32 %v285, %v453
      %455 = vmatprep.mubr.f32.mxu0 0.0
      %456 = vmatmul.mubr.f32.gmra.mrb[0].mxu0 %v317
      %v457 = vpop.f32.mrb[0].mxu0
      %v458 = vadd.f32 %v281, %v457
      %v459 = vpop.f32.mrb[0].mxu0
      %v460 = vadd.f32 %v285, %v459
      %461 = vmatprep.mubr.f32.mxu0 0.0
      %462 = vmatmul.mubr.f32.gmra.mrb[0].mxu0 %v320
      %v463 = vpop.f32.mrb[0].mxu0
      %v464 = vadd.f32 %v281, %v463
      %v465 = vpop.f32.mrb[0].mxu0
      %v466 = vadd.f32 %v285, %v465
      %467 = vmatprep.mubr.f32.mxu0 0.0
      %468 = vmatmul.mubr.f32.gmra.mrb[0].mxu0 %v323
      %v469 = vpop.f32.mrb[0].mxu0
      %v470 = vadd.f32 %v281, %v469
      %v471 = vpop.f32.mrb[0].mxu0
      %v472 = vadd.f32 %v285, %v471
      %473 = vmatprep.mubr.f32.mxu0 0.0
      %474 = vmatmul.mubr.f32.gmra.mrb[0].mxu0 %v326
      %v475 = vpop.f32.mrb[0].mxu0
      %v476 = vadd.f32 %v281, %v475
      %v477 = vpop.f32.mrb[0].mxu0
      %v478 = vadd.f32 %v285, %v477
      %479 = vmatprep.mubr.f32.mxu0 0.0
      %480 = vmatmul.mubr.f32.gmra.mrb[0].mxu0 %v329
      %v481 = vpop.f32.mrb[0].mxu0
      %v482 = vadd.f32 %v281, %v481
      %v483 = vpop.f32.mrb[0].mxu0
      %v484 = vadd.f32 %v285, %v483
      %485 = vmatprep.mubr.f32.mxu0 0.0
      %486 = vmatmul.mubr.f32.gmra.mrb[0].mxu0 %v332
      %v487 = vpop.f32.mrb[0].mxu0
      %v488 = vadd.f32 %v281, %v487
      %v489 = vpop.f32.mrb[0].mxu0
      %v490 = vadd.f32 %v285, %v489
      %491 = vmatprep.mubr.f32.mxu0 0.0
      %492 = vmatmul.mubr.f32.gmra.mrb[0].mxu0 %v335
      %v493 = vpop.f32.mrb[0].mxu0
      %v494 = vadd.f32 %v281, %v493
      %v495 = vpop.f32.mrb[0].mxu0
      %v496 = vadd.f32 %v285, %v495
      %497 = vdwg.mxu0
      %v498 = vmax.f32 %v404, 0.0
      %v499 = vmax.f32 %v406, 0.0
      %v500 = vmax.f32 %v410, 0.0
      %v501 = vmax.f32 %v412, 0.0
      %v502 = vmax.f32 %v416, 0.0
      %v503 = vmax.f32 %v418, 0.0
      %v504 = vmax.f32 %v422, 0.0
      %v505 = vmax.f32 %v424, 0.0
      %v506 = vmax.f32 %v428, 0.0
      %v507 = vmax.f32 %v430, 0.0
      %v508 = vmax.f32 %v434, 0.0
      %v509 = vmax.f32 %v436, 0.0
      %v510 = vmax.f32 %v440, 0.0
      %v511 = vmax.f32 %v442, 0.0
      %v512 = vmax.f32 %v446, 0.0
      %v513 = vmax.f32 %v448, 0.0
      %v514 = vmax.f32 %v452, 0.0
      %v515 = vmax.f32 %v454, 0.0
      %v516 = vmax.f32 %v458, 0.0
      %v517 = vmax.f32 %v460, 0.0
      %v518 = vmax.f32 %v464, 0.0
      %v519 = vmax.f32 %v466, 0.0
      %v520 = vmax.f32 %v470, 0.0
      %v521 = vmax.f32 %v472, 0.0
      %v522 = vmax.f32 %v476, 0.0
      %v523 = vmax.f32 %v478, 0.0
      %v524 = vmax.f32 %v482, 0.0
      %v525 = vmax.f32 %v484, 0.0
      %v526 = vmax.f32 %v488, 0.0
      %v527 = vmax.f32 %v490, 0.0
      %v528 = vmax.f32 %v494, 0.0
      %v529 = vmax.f32 %v496, 0.0
      %v530 = vld [vmem:[%s3] sm:$0xff]
      %v531 = vld [vmem:[%s3 + $0x8] sm:$0xff]
      %v532 = vld [vmem:[%s3 + $0x10] sm:$0xff]
      %v533 = vld [vmem:[%s3 + $0x18] sm:$0xff]
      %v534 = vld [vmem:[%s3 + $0x20] sm:$0xff]
      %v535 = vld [vmem:[%s3 + $0x28] sm:$0xff]
      %v536 = vld [vmem:[%s3 + $0x30] sm:$0xff]
      %v537 = vld [vmem:[%s3 + $0x38] sm:$0xff]
      %v538 = vld [vmem:[%s3 + $0x40] sm:$0xff]
      %v539 = vld [vmem:[%s3 + $0x48] sm:$0xff]
      %v540 = vld [vmem:[%s3 + $0x50] sm:$0xff]
      %v541 = vld [vmem:[%s3 + $0x58] sm:$0xff]
      %v542 = vld [vmem:[%s3 + $0x60] sm:$0xff]
      %v543 = vld [vmem:[%s3 + $0x68] sm:$0xff]
      %v544 = vld [vmem:[%s3 + $0x70] sm:$0xff]
      %v545 = vld [vmem:[%s3 + $0x78] sm:$0xff]
      %v546 = vld [vmem:[%s3 + $0x80] sm:$0xff]
      %v547 = vld [vmem:[%s3 + $0x88] sm:$0xff]
      %v548 = vld [vmem:[%s3 + $0x90] sm:$0xff]
      %v549 = vld [vmem:[%s3 + $0x98] sm:$0xff]
      %v550 = vld [vmem:[%s3 + $0xa0] sm:$0xff]
      %v551 = vld [vmem:[%s3 + $0xa8] sm:$0xff]
      %v552 = vld [vmem:[%s3 + $0xb0] sm:$0xff]
      %v553 = vld [vmem:[%s3 + $0xb8] sm:$0xff]
      %v554 = vld [vmem:[%s3 + $0xc0] sm:$0xff]
      %v555 = vld [vmem:[%s3 + $0xc8] sm:$0xff]
      %v556 = vld [vmem:[%s3 + $0xd0] sm:$0xff]
      %v557 = vld [vmem:[%s3 + $0xd8] sm:$0xff]
      %v558 = vld [vmem:[%s3 + $0xe0] sm:$0xff]
      %v559 = vld [vmem:[%s3 + $0xe8] sm:$0xff]
      %v560 = vld [vmem:[%s3 + $0xf0] sm:$0xff]
      %v561 = vld [vmem:[%s3 + $0xf8] sm:$0xff]
      %v562 = vld [vmem:[%s4] sm:$0x1]
      %v564 = vlaneseq
      %v565 = vshrl.u32 %v564, 7
      %v566 = vsub.s32 0, %v565
      %v567 = vrot.slane %v562, %v566
      %569 = vmatprep.subr.mxu0 0.0
      %570 = vmatpush1.msra.mxu0 %v530
      %571 = vmatprep.subr.mxu0 0.0
      %572 = vmatpush1.msra.mxu0 %v531
      %573 = vmatprep.subr.mxu0 0.0
      %574 = vmatpush1.msra.mxu0 %v532
      %575 = vmatprep.subr.mxu0 0.0
      %576 = vmatpush1.msra.mxu0 %v533
      %577 = vmatprep.subr.mxu0 0.0
      %578 = vmatpush1.msra.mxu0 %v534
      %579 = vmatprep.subr.mxu0 0.0
      %580 = vmatpush1.msra.mxu0 %v535
      %581 = vmatprep.subr.mxu0 0.0
      %582 = vmatpush1.msra.mxu0 %v536
      %583 = vmatprep.subr.mxu0 0.0
      %584 = vmatpush1.msra.mxu0 %v537
      %585 = vmatprep.subr.mxu0 0.0
      %586 = vmatpush1.msra.mxu0 %v538
      %587 = vmatprep.subr.mxu0 0.0
      %588 = vmatpush1.msra.mxu0 %v539
      %589 = vmatprep.subr.mxu0 0.0
      %590 = vmatpush1.msra.mxu0 %v540
      %591 = vmatprep.subr.mxu0 0.0
      %592 = vmatpush1.msra.mxu0 %v541
      %593 = vmatprep.subr.mxu0 0.0
      %594 = vmatpush1.msra.mxu0 %v542
      %595 = vmatprep.subr.mxu0 0.0
      %596 = vmatpush1.msra.mxu0 %v543
      %597 = vmatprep.subr.mxu0 0.0
      %598 = vmatpush1.msra.mxu0 %v544
      %599 = vmatprep.subr.mxu0 0.0
      %600 = vmatpush1.msra.mxu0 %v545
      %601 = vmatprep.subr.mxu0 0.0
      %602 = vmatpush1.msra.mxu0 %v546
      %603 = vmatprep.subr.mxu0 0.0
      %604 = vmatpush1.msra.mxu0 %v547
      %605 = vmatprep.subr.mxu0 0.0
      %606 = vmatpush1.msra.mxu0 %v548
      %607 = vmatprep.subr.mxu0 0.0
      %608 = vmatpush1.msra.mxu0 %v549
      %609 = vmatprep.subr.mxu0 0.0
      %610 = vmatpush1.msra.mxu0 %v550
      %611 = vmatprep.subr.mxu0 0.0
      %612 = vmatpush1.msra.mxu0 %v551
      %613 = vmatprep.subr.mxu0 0.0
      %614 = vmatpush1.msra.mxu0 %v552
      %615 = vmatprep.subr.mxu0 0.0
      %616 = vmatpush1.msra.mxu0 %v553
      %617 = vmatprep.subr.mxu0 0.0
      %618 = vmatpush1.msra.mxu0 %v554
      %619 = vmatprep.subr.mxu0 0.0
      %620 = vmatpush1.msra.mxu0 %v555
      %621 = vmatprep.subr.mxu0 0.0
      %622 = vmatpush1.msra.mxu0 %v556
      %623 = vmatprep.subr.mxu0 0.0
      %624 = vmatpush1.msra.mxu0 %v557
      %625 = vmatprep.subr.mxu0 0.0
      %626 = vmatpush1.msra.mxu0 %v558
      %627 = vmatprep.subr.mxu0 0.0
      %628 = vmatpush1.msra.mxu0 %v559
      %629 = vmatprep.subr.mxu0 0.0
      %630 = vmatpush1.msra.mxu0 %v560
      %631 = vmatprep.subr.mxu0 0.0
      %632 = vmatpush1.msra.mxu0 %v561
      %633 = vmatprep.mubr.f32.mxu0 %v499
      %634 = vmatmul.mubr.f32.gmra.mrb[0].mxu0 %v498
      %v635 = vpop.f32.mrb[0].mxu0
      %v636 = vadd.f32 %v567, %v635
      %v637 = vpop.f32.mrb[0].mxu0
      %638 = vmatprep.mubr.f32.mxu0 %v501
      %639 = vmatmul.mubr.f32.gmra.mrb[0].mxu0 %v500
      %v640 = vpop.f32.mrb[0].mxu0
      %v641 = vadd.f32 %v567, %v640
      %v642 = vpop.f32.mrb[0].mxu0
      %643 = vmatprep.mubr.f32.mxu0 %v503
      %644 = vmatmul.mubr.f32.gmra.mrb[0].mxu0 %v502
      %v645 = vpop.f32.mrb[0].mxu0
      %v646 = vadd.f32 %v567, %v645
      %v647 = vpop.f32.mrb[0].mxu0
      %648 = vmatprep.mubr.f32.mxu0 %v505
      %649 = vmatmul.mubr.f32.gmra.mrb[0].mxu0 %v504
      %v650 = vpop.f32.mrb[0].mxu0
      %v651 = vadd.f32 %v567, %v650
      %v652 = vpop.f32.mrb[0].mxu0
      %653 = vmatprep.mubr.f32.mxu0 %v507
      %654 = vmatmul.mubr.f32.gmra.mrb[0].mxu0 %v506
      %v655 = vpop.f32.mrb[0].mxu0
      %v656 = vadd.f32 %v567, %v655
      %v657 = vpop.f32.mrb[0].mxu0
      %658 = vmatprep.mubr.f32.mxu0 %v509
      %659 = vmatmul.mubr.f32.gmra.mrb[0].mxu0 %v508
      %v660 = vpop.f32.mrb[0].mxu0
      %v661 = vadd.f32 %v567, %v660
      %v662 = vpop.f32.mrb[0].mxu0
      %663 = vmatprep.mubr.f32.mxu0 %v511
      %664 = vmatmul.mubr.f32.gmra.mrb[0].mxu0 %v510
      %v665 = vpop.f32.mrb[0].mxu0
      %v666 = vadd.f32 %v567, %v665
      %v667 = vpop.f32.mrb[0].mxu0
      %668 = vmatprep.mubr.f32.mxu0 %v513
      %669 = vmatmul.mubr.f32.gmra.mrb[0].mxu0 %v512
      %v670 = vpop.f32.mrb[0].mxu0
      %v671 = vadd.f32 %v567, %v670
      %v672 = vpop.f32.mrb[0].mxu0
      %673 = vmatprep.mubr.f32.mxu0 %v515
      %674 = vmatmul.mubr.f32.gmra.mrb[0].mxu0 %v514
      %v675 = vpop.f32.mrb[0].mxu0
      %v676 = vadd.f32 %v567, %v675
      %v677 = vpop.f32.mrb[0].mxu0
      %678 = vmatprep.mubr.f32.mxu0 %v517
      %679 = vmatmul.mubr.f32.gmra.mrb[0].mxu0 %v516
      %v680 = vpop.f32.mrb[0].mxu0
      %v681 = vadd.f32 %v567, %v680
      %v682 = vpop.f32.mrb[0].mxu0
      %683 = vmatprep.mubr.f32.mxu0 %v519
      %684 = vmatmul.mubr.f32.gmra.mrb[0].mxu0 %v518
      %v685 = vpop.f32.mrb[0].mxu0
      %v686 = vadd.f32 %v567, %v685
      %v687 = vpop.f32.mrb[0].mxu0
      %688 = vmatprep.mubr.f32.mxu0 %v521
      %689 = vmatmul.mubr.f32.gmra.mrb[0].mxu0 %v520
      %v690 = vpop.f32.mrb[0].mxu0
      %v691 = vadd.f32 %v567, %v690
      %v692 = vpop.f32.mrb[0].mxu0
      %693 = vmatprep.mubr.f32.mxu0 %v523
      %694 = vmatmul.mubr.f32.gmra.mrb[0].mxu0 %v522
      %v695 = vpop.f32.mrb[0].mxu0
      %v696 = vadd.f32 %v567, %v695
      %v697 = vpop.f32.mrb[0].mxu0
      %698 = vmatprep.mubr.f32.mxu0 %v525
      %699 = vmatmul.mubr.f32.gmra.mrb[0].mxu0 %v524
      %v700 = vpop.f32.mrb[0].mxu0
      %v701 = vadd.f32 %v567, %v700
      %v702 = vpop.f32.mrb[0].mxu0
      %703 = vmatprep.mubr.f32.mxu0 %v527
      %704 = vmatmul.mubr.f32.gmra.mrb[0].mxu0 %v526
      %v705 = vpop.f32.mrb[0].mxu0
      %v706 = vadd.f32 %v567, %v705
      %v707 = vpop.f32.mrb[0].mxu0
      %708 = vmatprep.mubr.f32.mxu0 %v529
      %709 = vmatmul.mubr.f32.gmra.mrb[0].mxu0 %v528
      %v710 = vpop.f32.mrb[0].mxu0
      %v711 = vadd.f32 %v567, %v710
      %v712 = vpop.f32.mrb[0].mxu0
      %713 = vdwg.mxu0
      %v714 = vadd.f32 %v228, %v636
      %v715 = vadd.f32 %v229, %v641
      %v716 = vadd.f32 %v230, %v646
      %v717 = vadd.f32 %v231, %v651
      %v718 = vadd.f32 %v232, %v656
      %v719 = vadd.f32 %v233, %v661
      %v720 = vadd.f32 %v234, %v666
      %v721 = vadd.f32 %v235, %v671
      %v722 = vadd.f32 %v236, %v676
      %v723 = vadd.f32 %v237, %v681
      %v724 = vadd.f32 %v238, %v686
      %v725 = vadd.f32 %v239, %v691
      %v726 = vadd.f32 %v240, %v696
      %v727 = vadd.f32 %v241, %v701
      %v728 = vadd.f32 %v242, %v706
      %v729 = vadd.f32 %v243, %v711
      %730 = vst.msk [vmem:[%s226] sm:$0xff] %vm288, %v714
      %731 = vst.msk [vmem:[%s226 + $0x8] sm:$0xff] %vm288, %v715
      %732 = vst.msk [vmem:[%s226 + $0x10] sm:$0xff] %vm288, %v716
      %733 = vst.msk [vmem:[%s226 + $0x18] sm:$0xff] %vm288, %v717
      %734 = vst.msk [vmem:[%s226 + $0x20] sm:$0xff] %vm288, %v718
      %735 = vst.msk [vmem:[%s226 + $0x28] sm:$0xff] %vm288, %v719
      %736 = vst.msk [vmem:[%s226 + $0x30] sm:$0xff] %vm288, %v720
      %737 = vst.msk [vmem:[%s226 + $0x38] sm:$0xff] %vm288, %v721
      %738 = vst.msk [vmem:[%s226 + $0x40] sm:$0xff] %vm288, %v722
      %739 = vst.msk [vmem:[%s226 + $0x48] sm:$0xff] %vm288, %v723
      %740 = vst.msk [vmem:[%s226 + $0x50] sm:$0xff] %vm288, %v724
      %741 = vst.msk [vmem:[%s226 + $0x58] sm:$0xff] %vm288, %v725
      %742 = vst.msk [vmem:[%s226 + $0x60] sm:$0xff] %vm288, %v726
      %743 = vst.msk [vmem:[%s226 + $0x68] sm:$0xff] %vm288, %v727
      %744 = vst.msk [vmem:[%s226 + $0x70] sm:$0xff] %vm288, %v728
      %745 = vst.msk [vmem:[%s226 + $0x78] sm:$0xff] %vm288, %v729
      %s746 = smul.u32 16, %s16
      %p747 = scmp.lt.s32.totalorder %s746, 31
      %s748 = scalar_select %p747, %s746, 31
      %s749 = smul.addr %s748, 8
      %s750 = scalar_lea.vmem %s5, %s749
      // Predicated region
      $region41: #{tpu_custom_call.1} parent=39 // pred_check
        %p751 = pneg %p144
      $region42: #{tpu_custom_call.1} parent=39 // pred_check_branch
        %753 = sbr.rel (%p751) target = $region44
      $region43: #{tpu_custom_call.1} parent=39 // pred_region
        %s754 = smul.u32 16, %s16
      $region44: #{tpu_custom_call.1} parent=39 // pred_fallthru
        _
    $region40: #{tpu_custom_call.1} parent=5 // pred_fallthru
      _
    %p755 = scmp.le.s32.totalorder 2, %s11
    // Predicated region
    $region45: #{tpu_custom_call.1} parent=5 // pred_check
      %p756 = pneg %p755
    $region46: #{tpu_custom_call.1} parent=5 // pred_check_branch
      %758 = sbr.rel (%p756) target = $region48
    $region47: #{tpu_custom_call.1} parent=5 // pred_region
      %s759 = ssub.s32 %s11, 2
      // Predicated region
      $region49: #{tpu_custom_call.1} parent=47 // pred_check
        %p760 = pneg %p150
      $region50: #{tpu_custom_call.1} parent=47 // pred_check_branch
        %762 = sbr.rel (%p760) target = $region52
      $region51: #{tpu_custom_call.1} parent=47 // pred_region
        %s763 = smul.u32 16, %s17
        %p764 = scmp.lt.s32.totalorder %s763, 31
        %s765 = scalar_select %p764, %s763, 31
        %s766 = smul.addr %s765, 8
        %s767 = scalar_lea.vmem %s5, %s766
      $region52: #{tpu_custom_call.1} parent=47 // pred_fallthru
        _
    $region48: #{tpu_custom_call.1} parent=5 // pred_fallthru
      _
  $region6: #{tpu_custom_call.1} parent=0 // loop_footer
    %s15 = sadd.s32 1, %s11
  $region7: #{tpu_custom_call.1} parent=0 // loop_footer_branch
    %10 = sbr.rel target = $region3
  $region8: #{tpu_custom_call.1} parent=0 // loop_exit
    _

</llo_original>
